<compile_context>
chip_gen: v7x
topology: tpu7x:2x2x1
jax: 0.10.0
libtpu: 0.0.40
codegen_flags: <defaults>
</compile_context>

<pallas_src>
import jax
import jax.numpy as jnp
from jax.experimental import pallas as pl
from jax.experimental.pallas import tpu as pltpu


def _round_up(x, m):
    return ((x + m - 1) // m) * m


def make_ncf_kernel(num_fc):
    """Builds the fused NCF kernel for a fixed number of MLP layers."""

    def kernel(*refs):
        (uid_ref, iid_ref, cu_ref, ci_ref,
         w1u_ref, w1i_ref, b1_ref) = refs[:7]
        base = 7 + 2 * (num_fc - 1)
        mid_refs = refs[7:base]                    # (W^T, b^T) pairs for fc[1:]
        wog_ref, wom_ref, bo_ref = refs[base:base + 3]
        o_ref = refs[base + 3]                     # (1, TB)

        f32 = jnp.float32
        U = cu_ref.shape[1]
        I = ci_ref.shape[1]
        TB = uid_ref.shape[1]

        uid = uid_ref[...]                         # (1, TB) int32
        iid = iid_ref[...]                         # (1, TB) int32

        # Vectorized gather: one-hot (rows, TB) selection matrices -> MXU.
        u_oh = (jax.lax.broadcasted_iota(jnp.int32, (U, TB), 0) == uid).astype(f32)
        i_oh = (jax.lax.broadcasted_iota(jnp.int32, (I, TB), 0) == iid).astype(f32)

        # Fused gather of both embedding tables per side: (2D, TB) tiles.
        # Feature rows [0, D) hold the GMF embedding, rows [D, 2D) the MLP one.
        u_comb = jnp.dot(cu_ref[...], u_oh, preferred_element_type=f32)
        i_comb = jnp.dot(ci_ref[...], i_oh, preferred_element_type=f32)

        # --- GMF branch: elementwise product.  The MLP-lane rows are ignored
        # downstream because the padded output weight has zeros there. --------
        prod = u_comb * i_comb                     # (2D, TB)

        # --- MLP branch.  First FC over concat([mlp_u, mlp_i]) expressed as
        # two partial matmuls against zero-padded (pre-transposed) weights. ---
        x = (jnp.dot(w1u_ref[...], u_comb, preferred_element_type=f32)
             + jnp.dot(w1i_ref[...], i_comb, preferred_element_type=f32)
             + b1_ref[...])                        # (L1, TB)
        x = jnp.maximum(x, 0.0)

        for k in range(num_fc - 1):
            w = mid_refs[2 * k][...]               # (L_{k+1}, L_k)
            b = mid_refs[2 * k + 1][...]           # (L_{k+1}, 1)
            x = jnp.maximum(jnp.dot(w, x, preferred_element_type=f32) + b, 0.0)

        # --- Output layer over concat([gmf_vec, x]), lane-dense (1, TB). -----
        logit = (jnp.dot(wog_ref[...], prod, preferred_element_type=f32)
                 + jnp.dot(wom_ref[...], x, preferred_element_type=f32)
                 + bo_ref[...])                    # (1, TB)

        # Sigmoid on a single dense lane row (exp runs on the EUP slot).
        o_ref[...] = 1.0 / (1.0 + jnp.exp(-logit))

    return kernel


def ncf_forward(user_id, item_id, params, *, block_b=256):
    """Pallas NCF forward.

    user_id, item_id : int (batch,)
    params           : dict with gmf/mlp embedding tables (rows, D) f32,
                       "fc" = list of (W (in,out), b (1,out)),
                       "out_w" (D + L_last, 1), "out_b" (1, 1)
    returns          : float32 (batch,)  -- sigmoid scores
    """
    gmf_u = params["gmf_user_embed"]
    gmf_i = params["gmf_item_embed"]
    mlp_u = params["mlp_user_embed"]
    mlp_i = params["mlp_item_embed"]
    fc = params["fc"]
    w_out = params["out_w"]
    b_out = params["out_b"]

    batch = user_id.shape[0]
    U, D = gmf_u.shape
    I = gmf_i.shape[0]
    num_fc = len(fc)
    L_last = fc[-1][0].shape[1]
    assert num_fc >= 1, "NCF MLP needs at least one FC layer"
    assert fc[0][0].shape[0] == 2 * D, "layers[0] must equal 2 * embed_dim"
    assert w_out.shape[0] == D + L_last

    f32 = jnp.float32

    # --- Batch tiling: lane-dense tiles (multiple of 128). -------------------
    block_b = max(128, _round_up(block_b, 128))
    TB = min(block_b, _round_up(batch, 128))
    # Prefer >= 2 grid steps when the batch allows it (2 TensorCores on v7x);
    # the extra fixed per-step cost is negligible on single-TC v5e/v6e.
    if TB == _round_up(batch, 128) and TB % 256 == 0:
        TB //= 2
    padded = _round_up(batch, TB)
    grid = (padded // TB,)

    # ids: clip (gather-clamp semantics), pad to whole tiles, lane-dense rows.
    uid = jnp.clip(user_id.astype(jnp.int32), 0, U - 1)
    iid = jnp.clip(item_id.astype(jnp.int32), 0, I - 1)
    uid = jnp.pad(uid, (0, padded - batch)).reshape(1, padded)
    iid = jnp.pad(iid, (0, padded - batch)).reshape(1, padded)

    # --- One-time (XLA-side) weight plumbing into the transposed layout. -----
    # Combined per-side tables, transposed to (2D, rows): rows of the gathered
    # (2D, TB) tile are [gmf(0..D-1) | mlp(D..2D-1)].
    cu = jnp.concatenate([gmf_u, mlp_u], axis=1).T.astype(f32)       # (2D, U)
    ci = jnp.concatenate([gmf_i, mlp_i], axis=1).T.astype(f32)       # (2D, I)

    # First FC: W1 (2D, L1) acting on concat([mlp_u, mlp_i]).  Zero-pad the
    # gmf rows so the kernel consumes the full (2D, TB) gathered tile directly.
    W1, b1 = fc[0]
    L1 = W1.shape[1]
    zD = jnp.zeros((D, L1), f32)
    w1u = jnp.concatenate([zD, W1[:D, :].astype(f32)], axis=0).T     # (L1, 2D)
    w1i = jnp.concatenate([zD, W1[D:, :].astype(f32)], axis=0).T     # (L1, 2D)
    b1t = b1.reshape(L1, 1).astype(f32)                              # (L1, 1)

    mids = []
    for W, b in fc[1:]:
        mids += [W.T.astype(f32), b.reshape(-1, 1).astype(f32)]      # (Lo,Li),(Lo,1)

    # Output layer: gmf part as a zero-padded (1, 2D) row over the elementwise
    # product tile; mlp part as a (1, L_last) row over the final activations.
    wog = jnp.concatenate(
        [w_out[:D, 0].astype(f32), jnp.zeros((D,), f32)]).reshape(1, 2 * D)
    wom = w_out[D:, :].T.astype(f32)                                 # (1, L_last)
    bo = b_out.reshape(1, 1).astype(f32)                             # (1, 1)

    operands = [uid, iid, cu, ci, w1u, w1i, b1t] + mids + [wog, wom, bo]

    id_spec = pl.BlockSpec((1, TB), lambda i: (0, i))

    def full_spec(a):
        # Whole array staged into VMEM once (constant block index across grid).
        return pl.BlockSpec(a.shape, lambda i: (0, 0))

    in_specs = [id_spec, id_spec] + [full_spec(a) for a in operands[2:]]
    out_specs = pl.BlockSpec((1, TB), lambda i: (0, i))

    grid_spec = pl.GridSpec(grid=grid, in_specs=in_specs, out_specs=out_specs)

    out = pl.pallas_call(
        make_ncf_kernel(num_fc),
        out_shape=jax.ShapeDtypeStruct((1, padded), jnp.float32),
        grid_spec=grid_spec,
        compiler_params=pltpu.CompilerParams(
            # Independent output tiles -> parallel (2 TCs on v7x, neutral else).
            dimension_semantics=("parallel",),
            # Explicit, generation-safe VMEM budget (footprint here is < 2 MiB).
            vmem_limit_bytes=32 * 1024 * 1024,
        ),
    )(*operands)

    return out[0, :batch]


if __name__ == "__main__":
    # Small shapes consistent with NCF(user_num, item_num, embed_dim, layers).
    user_num, item_num, embed_dim = 128, 192, 64
    layers = [2 * embed_dim, 64, 32, 16]   # layers[0] == 2 * embed_dim
    batch = 512

    key = jax.random.PRNGKey(0)
    ks = jax.random.split(key, 16)

    def normal(k, shape, std):
        return (std * jax.random.normal(k, shape)).astype(jnp.float32)

    def xavier(k, fan_in, fan_out):
        std = (2.0 / (fan_in + fan_out)) ** 0.5
        return (std * jax.random.normal(k, (fan_in, fan_out))).astype(jnp.float32)

    params = {
        "gmf_user_embed": normal(ks[0], (user_num, embed_dim), 0.01),
        "gmf_item_embed": normal(ks[1], (item_num, embed_dim), 0.01),
        "mlp_user_embed": normal(ks[2], (user_num, embed_dim), 0.01),
        "mlp_item_embed": normal(ks[3], (item_num, embed_dim), 0.01),
    }
    fc = []
    for idx, (fi, fo) in enumerate(zip(layers[:-1], layers[1:])):
        W = xavier(ks[4 + idx], fi, fo)
        b = normal(ks[8 + idx], (1, fo), 0.01)   # small nonzero bias to exercise the path
        fc.append((W, b))
    params["fc"] = fc
    params["out_w"] = xavier(ks[12], embed_dim + layers[-1], 1)
    params["out_b"] = normal(ks[13], (1, 1), 0.01)

    user_id = jax.random.randint(ks[14], (batch,), 0, user_num, dtype=jnp.int32)
    item_id = jax.random.randint(ks[15], (batch,), 0, item_num, dtype=jnp.int32)

    out = ncf_forward(user_id, item_id, params, block_b=256)
    out = jax.block_until_ready(out)

    # Plain-JAX reference matching torch NCF.forward.
    def ref_forward(uid, iid, p):
        gmf = p["gmf_user_embed"][uid] * p["gmf_item_embed"][iid]
        x = jnp.concatenate([p["mlp_user_embed"][uid], p["mlp_item_embed"][iid]], axis=-1)
        for W, b in p["fc"]:
            x = jnp.maximum(x @ W + b, 0.0)
        ncf = jnp.concatenate([gmf, x], axis=-1)
        logit = ncf @ p["out_w"] + p["out_b"]
        return (1.0 / (1.0 + jnp.exp(-logit)))[:, 0]

    ref = ref_forward(user_id, item_id, params)
    assert out.shape == (batch,)
    assert jnp.allclose(out, ref, atol=1e-5, rtol=1e-5), (
        "mismatch vs reference, max abs err = %g" % float(jnp.max(jnp.abs(out - ref))))

    print("KERNEL_OK")
</pallas_src>

<mosaic_0001>
module attributes {stable_mosaic.version = 11 : i64} {
  func.func @kernel(%arg0: i32, %arg1: memref<1x256xi32, #tpu.memory_space<vmem>>, %arg2: memref<1x256xi32, #tpu.memory_space<vmem>>, %arg3: memref<128x128xf32, #tpu.memory_space<vmem>>, %arg4: memref<128x192xf32, #tpu.memory_space<vmem>>, %arg5: memref<64x128xf32, #tpu.memory_space<vmem>>, %arg6: memref<64x128xf32, #tpu.memory_space<vmem>>, %arg7: memref<64x1xf32, #tpu.memory_space<vmem>>, %arg8: memref<32x64xf32, #tpu.memory_space<vmem>>, %arg9: memref<32x1xf32, #tpu.memory_space<vmem>>, %arg10: memref<16x32xf32, #tpu.memory_space<vmem>>, %arg11: memref<16x1xf32, #tpu.memory_space<vmem>>, %arg12: memref<1x128xf32, #tpu.memory_space<vmem>>, %arg13: memref<1x16xf32, #tpu.memory_space<vmem>>, %arg14: memref<1x1xf32, #tpu.memory_space<vmem>>, %arg15: memref<1x256xf32, #tpu.memory_space<vmem>>) attributes {dimension_semantics = [#tpu.dimension_semantics<parallel>], iteration_bounds = array<i64: 2>, scalar_prefetch = 0 : i64, scratch_operands = 0 : i64, tpu.core_type = #tpu.core_type<tc>, window_params = [{transform_indices = @transform_0, window_bounds = array<i64: 1, 256>}, {transform_indices = @transform_1, window_bounds = array<i64: 1, 256>}, {pipeline_mode = #tpu.pipeline_mode<synchronous>, transform_indices = @transform_2, window_bounds = array<i64: 128, 128>}, {pipeline_mode = #tpu.pipeline_mode<synchronous>, transform_indices = @transform_3, window_bounds = array<i64: 128, 192>}, {pipeline_mode = #tpu.pipeline_mode<synchronous>, transform_indices = @transform_4, window_bounds = array<i64: 64, 128>}, {pipeline_mode = #tpu.pipeline_mode<synchronous>, transform_indices = @transform_5, window_bounds = array<i64: 64, 128>}, {pipeline_mode = #tpu.pipeline_mode<synchronous>, transform_indices = @transform_6, window_bounds = array<i64: 64, 1>}, {pipeline_mode = #tpu.pipeline_mode<synchronous>, transform_indices = @transform_7, window_bounds = array<i64: 32, 64>}, {pipeline_mode = #tpu.pipeline_mode<synchronous>, transform_indices = @transform_8, window_bounds = array<i64: 32, 1>}, {pipeline_mode = #tpu.pipeline_mode<synchronous>, transform_indices = @transform_9, window_bounds = array<i64: 16, 32>}, {pipeline_mode = #tpu.pipeline_mode<synchronous>, transform_indices = @transform_10, window_bounds = array<i64: 16, 1>}, {pipeline_mode = #tpu.pipeline_mode<synchronous>, transform_indices = @transform_11, window_bounds = array<i64: 1, 128>}, {pipeline_mode = #tpu.pipeline_mode<synchronous>, transform_indices = @transform_12, window_bounds = array<i64: 1, 16>}, {pipeline_mode = #tpu.pipeline_mode<synchronous>, transform_indices = @transform_13, window_bounds = array<i64: 1, 1>}, {transform_indices = @transform_14, window_bounds = array<i64: 1, 256>}]} {
    %c0 = arith.constant 0 : index
    %c0_0 = arith.constant 0 : index
    %0 = vector.load %arg1[%c0, %c0_0] : memref<1x256xi32, #tpu.memory_space<vmem>>, vector<1x256xi32>
    %c0_1 = arith.constant 0 : index
    %c0_2 = arith.constant 0 : index
    %1 = vector.load %arg2[%c0_1, %c0_2] : memref<1x256xi32, #tpu.memory_space<vmem>>, vector<1x256xi32>
    %2 = tpu.iota {dimensions = array<i32: 0>} : vector<128x256xi32>
    %3 = vector.broadcast %0 : vector<1x256xi32> to vector<128x256xi32>
    %4 = arith.cmpi eq, %2, %3 : vector<128x256xi32>
    %5 = arith.extui %4 : vector<128x256xi1> to vector<128x256xi32>
    %6 = arith.sitofp %5 : vector<128x256xi32> to vector<128x256xf32>
    %7 = tpu.iota {dimensions = array<i32: 0>} : vector<192x256xi32>
    %8 = vector.broadcast %1 : vector<1x256xi32> to vector<192x256xi32>
    %9 = arith.cmpi eq, %7, %8 : vector<192x256xi32>
    %10 = arith.extui %9 : vector<192x256xi1> to vector<192x256xi32>
    %11 = arith.sitofp %10 : vector<192x256xi32> to vector<192x256xf32>
    %c0_3 = arith.constant 0 : index
    %c0_4 = arith.constant 0 : index
    %12 = vector.load %arg3[%c0_3, %c0_4] : memref<128x128xf32, #tpu.memory_space<vmem>>, vector<128x128xf32>
    %cst = arith.constant dense<0.000000e+00> : vector<128x256xf32>
    %13 = tpu.matmul %12, %6, %cst {dimension_numbers = #tpu.dot_dimension_numbers<[1], [0], [0], [1], [0, 0, 1, 1], [], []>} : vector<128x128xf32>, vector<128x256xf32>, vector<128x256xf32> -> vector<128x256xf32>
    %c0_5 = arith.constant 0 : index
    %c0_6 = arith.constant 0 : index
    %14 = vector.load %arg4[%c0_5, %c0_6] : memref<128x192xf32, #tpu.memory_space<vmem>>, vector<128x192xf32>
    %cst_7 = arith.constant dense<0.000000e+00> : vector<128x256xf32>
    %15 = tpu.matmul %14, %11, %cst_7 {dimension_numbers = #tpu.dot_dimension_numbers<[1], [0], [0], [1], [0, 0, 1, 1], [], []>} : vector<128x192xf32>, vector<192x256xf32>, vector<128x256xf32> -> vector<128x256xf32>
    %16 = arith.mulf %13, %15 : vector<128x256xf32>
    %c0_8 = arith.constant 0 : index
    %c0_9 = arith.constant 0 : index
    %17 = vector.load %arg5[%c0_8, %c0_9] : memref<64x128xf32, #tpu.memory_space<vmem>>, vector<64x128xf32>
    %cst_10 = arith.constant dense<0.000000e+00> : vector<64x256xf32>
    %18 = tpu.matmul %17, %13, %cst_10 {dimension_numbers = #tpu.dot_dimension_numbers<[1], [0], [0], [1], [0, 0, 1, 1], [], []>} : vector<64x128xf32>, vector<128x256xf32>, vector<64x256xf32> -> vector<64x256xf32>
    %c0_11 = arith.constant 0 : index
    %c0_12 = arith.constant 0 : index
    %19 = vector.load %arg6[%c0_11, %c0_12] : memref<64x128xf32, #tpu.memory_space<vmem>>, vector<64x128xf32>
    %cst_13 = arith.constant dense<0.000000e+00> : vector<64x256xf32>
    %20 = tpu.matmul %19, %15, %cst_13 {dimension_numbers = #tpu.dot_dimension_numbers<[1], [0], [0], [1], [0, 0, 1, 1], [], []>} : vector<64x128xf32>, vector<128x256xf32>, vector<64x256xf32> -> vector<64x256xf32>
    %21 = arith.addf %18, %20 : vector<64x256xf32>
    %c0_14 = arith.constant 0 : index
    %c0_15 = arith.constant 0 : index
    %22 = vector.load %arg7[%c0_14, %c0_15] : memref<64x1xf32, #tpu.memory_space<vmem>>, vector<64x1xf32>
    %23 = vector.broadcast %22 : vector<64x1xf32> to vector<64x256xf32>
    %24 = arith.addf %21, %23 : vector<64x256xf32>
    %cst_16 = arith.constant 0.000000e+00 : f32
    %25 = vector.broadcast %cst_16 : f32 to vector<64x256xf32>
    %26 = arith.maximumf %24, %25 : vector<64x256xf32>
    %c0_17 = arith.constant 0 : index
    %c0_18 = arith.constant 0 : index
    %27 = vector.load %arg8[%c0_17, %c0_18] : memref<32x64xf32, #tpu.memory_space<vmem>>, vector<32x64xf32>
    %c0_19 = arith.constant 0 : index
    %c0_20 = arith.constant 0 : index
    %28 = vector.load %arg9[%c0_19, %c0_20] : memref<32x1xf32, #tpu.memory_space<vmem>>, vector<32x1xf32>
    %cst_21 = arith.constant dense<0.000000e+00> : vector<32x256xf32>
    %29 = tpu.matmul %27, %26, %cst_21 {dimension_numbers = #tpu.dot_dimension_numbers<[1], [0], [0], [1], [0, 0, 1, 1], [], []>} : vector<32x64xf32>, vector<64x256xf32>, vector<32x256xf32> -> vector<32x256xf32>
    %30 = vector.broadcast %28 : vector<32x1xf32> to vector<32x256xf32>
    %31 = arith.addf %29, %30 : vector<32x256xf32>
    %cst_22 = arith.constant 0.000000e+00 : f32
    %32 = vector.broadcast %cst_22 : f32 to vector<32x256xf32>
    %33 = arith.maximumf %31, %32 : vector<32x256xf32>
    %c0_23 = arith.constant 0 : index
    %c0_24 = arith.constant 0 : index
    %34 = vector.load %arg10[%c0_23, %c0_24] : memref<16x32xf32, #tpu.memory_space<vmem>>, vector<16x32xf32>
    %c0_25 = arith.constant 0 : index
    %c0_26 = arith.constant 0 : index
    %35 = vector.load %arg11[%c0_25, %c0_26] : memref<16x1xf32, #tpu.memory_space<vmem>>, vector<16x1xf32>
    %cst_27 = arith.constant dense<0.000000e+00> : vector<16x256xf32>
    %36 = tpu.matmul %34, %33, %cst_27 {dimension_numbers = #tpu.dot_dimension_numbers<[1], [0], [0], [1], [0, 0, 1, 1], [], []>} : vector<16x32xf32>, vector<32x256xf32>, vector<16x256xf32> -> vector<16x256xf32>
    %37 = vector.broadcast %35 : vector<16x1xf32> to vector<16x256xf32>
    %38 = arith.addf %36, %37 : vector<16x256xf32>
    %cst_28 = arith.constant 0.000000e+00 : f32
    %39 = vector.broadcast %cst_28 : f32 to vector<16x256xf32>
    %40 = arith.maximumf %38, %39 : vector<16x256xf32>
    %c0_29 = arith.constant 0 : index
    %c0_30 = arith.constant 0 : index
    %41 = vector.load %arg12[%c0_29, %c0_30] : memref<1x128xf32, #tpu.memory_space<vmem>>, vector<1x128xf32>
    %cst_31 = arith.constant dense<0.000000e+00> : vector<1x256xf32>
    %42 = tpu.matmul %41, %16, %cst_31 {dimension_numbers = #tpu.dot_dimension_numbers<[1], [0], [0], [1], [0, 0, 1, 1], [], []>} : vector<1x128xf32>, vector<128x256xf32>, vector<1x256xf32> -> vector<1x256xf32>
    %c0_32 = arith.constant 0 : index
    %c0_33 = arith.constant 0 : index
    %43 = vector.load %arg13[%c0_32, %c0_33] : memref<1x16xf32, #tpu.memory_space<vmem>>, vector<1x16xf32>
    %cst_34 = arith.constant dense<0.000000e+00> : vector<1x256xf32>
    %44 = tpu.matmul %43, %40, %cst_34 {dimension_numbers = #tpu.dot_dimension_numbers<[1], [0], [0], [1], [0, 0, 1, 1], [], []>} : vector<1x16xf32>, vector<16x256xf32>, vector<1x256xf32> -> vector<1x256xf32>
    %45 = arith.addf %42, %44 : vector<1x256xf32>
    %c0_35 = arith.constant 0 : index
    %c0_36 = arith.constant 0 : index
    %46 = vector.load %arg14[%c0_35, %c0_36] : memref<1x1xf32, #tpu.memory_space<vmem>>, vector<1x1xf32>
    %47 = vector.broadcast %46 : vector<1x1xf32> to vector<1x256xf32>
    %48 = arith.addf %45, %47 : vector<1x256xf32>
    %cst_37 = arith.constant 0.000000e+00 : f32
    %49 = vector.broadcast %cst_37 : f32 to vector<1x256xf32>
    %50 = arith.subf %49, %48 : vector<1x256xf32>
    %51 = math.exp %50 : vector<1x256xf32>
    %cst_38 = arith.constant 1.000000e+00 : f32
    %52 = vector.broadcast %cst_38 : f32 to vector<1x256xf32>
    %53 = arith.addf %52, %51 : vector<1x256xf32>
    %cst_39 = arith.constant 1.000000e+00 : f32
    %54 = vector.broadcast %cst_39 : f32 to vector<1x256xf32>
    %55 = arith.divf %54, %53 : vector<1x256xf32>
    %c0_40 = arith.constant 0 : index
    %c0_41 = arith.constant 0 : index
    %56 = vector.load %arg15[%c0_40, %c0_41] : memref<1x256xf32, #tpu.memory_space<vmem>>, vector<1x256xf32>
    tpu.vector_store %arg15[%c0_40, %c0_41], %55 {strides = array<i32>} : memref<1x256xf32, #tpu.memory_space<vmem>>, vector<1x256xf32>,
    return
  }
  func.func @transform_0(%arg0: i32) -> (i32, i32) {
    %c0_i32 = arith.constant 0 : i32
    %c0_i32_0 = arith.constant 0 : i32
    return %c0_i32, %arg0 : i32, i32
  }
  func.func @transform_1(%arg0: i32) -> (i32, i32) {
    %c0_i32 = arith.constant 0 : i32
    %c0_i32_0 = arith.constant 0 : i32
    return %c0_i32, %arg0 : i32, i32
  }
  func.func @transform_2(%arg0: i32) -> (i32, i32) {
    %c0_i32 = arith.constant 0 : i32
    %c0_i32_0 = arith.constant 0 : i32
    %c0_i32_1 = arith.constant 0 : i32
    return %c0_i32, %c0_i32_0 : i32, i32
  }
  func.func @transform_3(%arg0: i32) -> (i32, i32) {
    %c0_i32 = arith.constant 0 : i32
    %c0_i32_0 = arith.constant 0 : i32
    %c0_i32_1 = arith.constant 0 : i32
    return %c0_i32, %c0_i32_0 : i32, i32
  }
  func.func @transform_4(%arg0: i32) -> (i32, i32) {
    %c0_i32 = arith.constant 0 : i32
    %c0_i32_0 = arith.constant 0 : i32
    %c0_i32_1 = arith.constant 0 : i32
    return %c0_i32, %c0_i32_0 : i32, i32
  }
  func.func @transform_5(%arg0: i32) -> (i32, i32) {
    %c0_i32 = arith.constant 0 : i32
    %c0_i32_0 = arith.constant 0 : i32
    %c0_i32_1 = arith.constant 0 : i32
    return %c0_i32, %c0_i32_0 : i32, i32
  }
  func.func @transform_6(%arg0: i32) -> (i32, i32) {
    %c0_i32 = arith.constant 0 : i32
    %c0_i32_0 = arith.constant 0 : i32
    %c0_i32_1 = arith.constant 0 : i32
    return %c0_i32, %c0_i32_0 : i32, i32
  }
  func.func @transform_7(%arg0: i32) -> (i32, i32) {
    %c0_i32 = arith.constant 0 : i32
    %c0_i32_0 = arith.constant 0 : i32
    %c0_i32_1 = arith.constant 0 : i32
    return %c0_i32, %c0_i32_0 : i32, i32
  }
  func.func @transform_8(%arg0: i32) -> (i32, i32) {
    %c0_i32 = arith.constant 0 : i32
    %c0_i32_0 = arith.constant 0 : i32
    %c0_i32_1 = arith.constant 0 : i32
    return %c0_i32, %c0_i32_0 : i32, i32
  }
  func.func @transform_9(%arg0: i32) -> (i32, i32) {
    %c0_i32 = arith.constant 0 : i32
    %c0_i32_0 = arith.constant 0 : i32
    %c0_i32_1 = arith.constant 0 : i32
    return %c0_i32, %c0_i32_0 : i32, i32
  }
  func.func @transform_10(%arg0: i32) -> (i32, i32) {
    %c0_i32 = arith.constant 0 : i32
    %c0_i32_0 = arith.constant 0 : i32
    %c0_i32_1 = arith.constant 0 : i32
    return %c0_i32, %c0_i32_0 : i32, i32
  }
  func.func @transform_11(%arg0: i32) -> (i32, i32) {
    %c0_i32 = arith.constant 0 : i32
    %c0_i32_0 = arith.constant 0 : i32
    %c0_i32_1 = arith.constant 0 : i32
    return %c0_i32, %c0_i32_0 : i32, i32
  }
  func.func @transform_12(%arg0: i32) -> (i32, i32) {
    %c0_i32 = arith.constant 0 : i32
    %c0_i32_0 = arith.constant 0 : i32
    %c0_i32_1 = arith.constant 0 : i32
    return %c0_i32, %c0_i32_0 : i32, i32
  }
  func.func @transform_13(%arg0: i32) -> (i32, i32) {
    %c0_i32 = arith.constant 0 : i32
    %c0_i32_0 = arith.constant 0 : i32
    %c0_i32_1 = arith.constant 0 : i32
    return %c0_i32, %c0_i32_0 : i32, i32
  }
  func.func @transform_14(%arg0: i32) -> (i32, i32) {
    %c0_i32 = arith.constant 0 : i32
    %c0_i32_0 = arith.constant 0 : i32
    return %c0_i32, %arg0 : i32, i32
  }
}

</mosaic_0001>

<llo_original>
// kernel: tpu_custom_call.1
$region0: #{tpu_custom_call.1}
  #allocation0 [shape = 'u32[]', space=smem, size = 0x4, offset = 0x4, fixed_abs, tag = 'smem constant byte address 0x4 - core index']
  #allocation1 [shape = 'u32[144,128]{1,0:T(1,128)}', space=vmem, size = 0x12000, scoped, tag = 'internal scratch']
  #allocation2 [shape = 'f32[1,1]{1,0:T(1,128)S(1)}', space=vmem, size = 0x200, scoped, tag = 'scoped memory for tpu_custom_call.1']
  %s0 = inlined_call_operand.vmem [shape: s32[1,512], index: 0, kind: input, shape index: {}]
  %s1 = inlined_call_operand.vmem [shape: s32[1,512], index: 1, kind: input, shape index: {}]
  %s2 = inlined_call_operand.vmem [shape: f32[128,128], index: 2, kind: input, shape index: {}]
  %s3 = inlined_call_operand.vmem [shape: f32[128,192], index: 3, kind: input, shape index: {}]
  %s4 = inlined_call_operand.vmem [shape: f32[64,128], index: 4, kind: input, shape index: {}]
  %s5 = inlined_call_operand.vmem [shape: f32[64,128], index: 5, kind: input, shape index: {}]
  %s6 = inlined_call_operand.vmem [shape: f32[64,1], index: 6, kind: input, shape index: {}]
  %s7 = inlined_call_operand.vmem [shape: f32[32,64], index: 7, kind: input, shape index: {}]
  %s8 = inlined_call_operand.vmem [shape: f32[32,1], index: 8, kind: input, shape index: {}]
  %s9 = inlined_call_operand.vmem [shape: f32[16,32], index: 9, kind: input, shape index: {}]
  %s10 = inlined_call_operand.vmem [shape: f32[16,1], index: 10, kind: input, shape index: {}]
  %s11 = inlined_call_operand.vmem [shape: f32[1,128], index: 11, kind: input, shape index: {}]
  %s12 = inlined_call_operand.vmem [shape: f32[1,16], index: 12, kind: input, shape index: {}]
  %s13 = inlined_call_operand.<no memory space> [shape: f32[1,1], index: 13, kind: input, shape index: {}]
  %s14 = inlined_call_operand.hbm [shape: f32[1,512], index: 14, kind: output, shape index: {}]
  %s15 = sld [smem:[#allocation0]]
  $region89: #{tpu_custom_call.1} parent=0
    _
  %s17 = ssub.s32 1, %s15
  %s18 = scalar_select 0, %s17, %s15
  %v19 = vstv %s13
  %20 = vst [vmem:[#allocation2] sm:$0x1] %v19
  $region1: #{tpu_custom_call.1} parent=0
    #allocation3 [shape = 'u8[2048]{0}', space=vmem, size = 0x800, scoped, tag = 'output window, operand 0']
    #allocation4 [shape = 's32[2]{0}', space=sflag, size = 0x8, scoped, tag = 'scoped memory for tpu_custom_call.1']
    %21 = vsyncpa [#allocation4], 0
    %s22 = scalar_lea.sflag [#allocation4], 1
    %23 = vsyncpa %s22, 0
    loop: start=0, step=1, limit=4
    $region2: #{tpu_custom_call.1} parent=1 // loop_pre_header
      _
    $region3: #{tpu_custom_call.1} parent=1 // loop_header
      %s25 = sphi 0, %s29
      %p26 = scmp.ge.s32.totalorder %s25, 4
      %s35 = sphi 0, %s37
      %s38 = sphi 0, %s35
      %s39 = sphi 0, %s38
      %s55 = sphi 0, %s39
      %s61 = sphi 0, %s63
      %s64 = sphi 0, %s61
      %s65 = sphi 0, %s64
      %s81 = sphi 0, %s65
      %s85 = sphi 0, %s85
      %s87 = sphi 0, %s85
      %s88 = sphi 0, %s87
      %s102 = sphi 0, %s88
      %s106 = sphi 0, %s106
      %s108 = sphi 0, %s106
      %s109 = sphi 0, %s108
      %s123 = sphi 0, %s109
      %s127 = sphi 0, %s127
      %s129 = sphi 0, %s127
      %s130 = sphi 0, %s129
      %s144 = sphi 0, %s130
      %s148 = sphi 0, %s148
      %s150 = sphi 0, %s148
      %s151 = sphi 0, %s150
      %s165 = sphi 0, %s151
      %s169 = sphi 0, %s169
      %s171 = sphi 0, %s169
      %s172 = sphi 0, %s171
      %s186 = sphi 0, %s172
      %s190 = sphi 0, %s190
      %s192 = sphi 0, %s190
      %s193 = sphi 0, %s192
      %s207 = sphi 0, %s193
      %s211 = sphi 0, %s211
      %s213 = sphi 0, %s211
      %s214 = sphi 0, %s213
      %s228 = sphi 0, %s214
      %s232 = sphi 0, %s232
      %s234 = sphi 0, %s232
      %s235 = sphi 0, %s234
      %s249 = sphi 0, %s235
      %s253 = sphi 0, %s253
      %s255 = sphi 0, %s253
      %s256 = sphi 0, %s255
      %s270 = sphi 0, %s256
      %s274 = sphi 0, %s274
      %s276 = sphi 0, %s274
      %s277 = sphi 0, %s276
      %s291 = sphi 0, %s277
      %s295 = sphi 0, %s295
      %s297 = sphi 0, %s295
      %s298 = sphi 0, %s297
      %s312 = sphi 0, %s298
      %s316 = sphi 0, %s316
      %s318 = sphi 0, %s316
      %s319 = sphi 0, %s318
      %s333 = sphi 0, %s319
      %s339 = sphi 0, %s341
      %s342 = sphi 0, %s339
      %s343 = sphi 0, %s342
      %s359 = sphi 0, %s343
    $region4: #{tpu_custom_call.1} parent=1 // loop_header_branch
      %28 = sbr.rel (%p26) target = $region8
    $region5: #{tpu_custom_call.1} parent=1 // loop_body
      %s30 = ssub.s32 %s25, 1
      %s31 = ssub.s32 %s25, 2
      %s32 = sadd.s32 %s25, 1
      %s33 = ssub.s32 %s25, %s32
      %p34 = scmp.eq.s32.totalorder %s33, 0
      %s36 = sadd.s32 %s35, 1
      %s37 = scalar_select %p34, %s35, %s36
      %p40 = pneg %p34
      %p41 = scmp.eq.s32.totalorder %s25, 1
      %p42 = por %p40, %p41
      %p43 = scmp.ne.s32.totalorder %s35, %s38
      %p44 = scmp.eq.s32.totalorder %s25, 0
      %p45 = por %p43, %p44
      %p46 = scmp.ne.s32.totalorder %s35, %s38
      %p47 = scmp.eq.s32.totalorder %s30, 1
      %p48 = por %p46, %p47
      %p49 = scmp.ne.s32.totalorder %s38, %s39
      %p50 = scmp.eq.s32.totalorder %s30, 0
      %p51 = por %p49, %p50
      %p52 = scmp.ne.s32.totalorder %s38, %s39
      %p53 = scmp.eq.s32.totalorder %s31, 1
      %p54 = por %p52, %p53
      %p56 = scmp.ne.s32.totalorder %s39, %s55
      %p57 = scmp.eq.s32.totalorder %s31, 0
      %p58 = por %p56, %p57
      %s59 = ssub.s32 %s25, %s32
      %p60 = scmp.eq.s32.totalorder %s59, 0
      %s62 = sadd.s32 %s61, 1
      %s63 = scalar_select %p60, %s61, %s62
      %p66 = pneg %p60
      %p67 = scmp.eq.s32.totalorder %s25, 1
      %p68 = por %p66, %p67
      %p69 = scmp.ne.s32.totalorder %s61, %s64
      %p70 = scmp.eq.s32.totalorder %s25, 0
      %p71 = por %p69, %p70
      %p72 = scmp.ne.s32.totalorder %s61, %s64
      %p73 = scmp.eq.s32.totalorder %s30, 1
      %p74 = por %p72, %p73
      %p75 = scmp.ne.s32.totalorder %s64, %s65
      %p76 = scmp.eq.s32.totalorder %s30, 0
      %p77 = por %p75, %p76
      %p78 = scmp.ne.s32.totalorder %s64, %s65
      %p79 = scmp.eq.s32.totalorder %s31, 1
      %p80 = por %p78, %p79
      %p82 = scmp.ne.s32.totalorder %s65, %s81
      %p83 = scmp.eq.s32.totalorder %s31, 0
      %p84 = por %p82, %p83
      %s86 = sadd.s32 %s85, 1
      %p89 = scmp.eq.s32.totalorder %s25, 1
      %p90 = scmp.ne.s32.totalorder %s85, %s87
      %p91 = scmp.eq.s32.totalorder %s25, 0
      %p92 = por %p90, %p91
      %p93 = scmp.ne.s32.totalorder %s85, %s87
      %p94 = scmp.eq.s32.totalorder %s30, 1
      %p95 = por %p93, %p94
      %p96 = scmp.ne.s32.totalorder %s87, %s88
      %p97 = scmp.eq.s32.totalorder %s30, 0
      %p98 = por %p96, %p97
      %p99 = scmp.ne.s32.totalorder %s87, %s88
      %p100 = scmp.eq.s32.totalorder %s31, 1
      %p101 = por %p99, %p100
      %p103 = scmp.ne.s32.totalorder %s88, %s102
      %p104 = scmp.eq.s32.totalorder %s31, 0
      %p105 = por %p103, %p104
      %s107 = sadd.s32 %s106, 1
      %p110 = scmp.eq.s32.totalorder %s25, 1
      %p111 = scmp.ne.s32.totalorder %s106, %s108
      %p112 = scmp.eq.s32.totalorder %s25, 0
      %p113 = por %p111, %p112
      %p114 = scmp.ne.s32.totalorder %s106, %s108
      %p115 = scmp.eq.s32.totalorder %s30, 1
      %p116 = por %p114, %p115
      %p117 = scmp.ne.s32.totalorder %s108, %s109
      %p118 = scmp.eq.s32.totalorder %s30, 0
      %p119 = por %p117, %p118
      %p120 = scmp.ne.s32.totalorder %s108, %s109
      %p121 = scmp.eq.s32.totalorder %s31, 1
      %p122 = por %p120, %p121
      %p124 = scmp.ne.s32.totalorder %s109, %s123
      %p125 = scmp.eq.s32.totalorder %s31, 0
      %p126 = por %p124, %p125
      %s128 = sadd.s32 %s127, 1
      %p131 = scmp.eq.s32.totalorder %s25, 1
      %p132 = scmp.ne.s32.totalorder %s127, %s129
      %p133 = scmp.eq.s32.totalorder %s25, 0
      %p134 = por %p132, %p133
      %p135 = scmp.ne.s32.totalorder %s127, %s129
      %p136 = scmp.eq.s32.totalorder %s30, 1
      %p137 = por %p135, %p136
      %p138 = scmp.ne.s32.totalorder %s129, %s130
      %p139 = scmp.eq.s32.totalorder %s30, 0
      %p140 = por %p138, %p139
      %p141 = scmp.ne.s32.totalorder %s129, %s130
      %p142 = scmp.eq.s32.totalorder %s31, 1
      %p143 = por %p141, %p142
      %p145 = scmp.ne.s32.totalorder %s130, %s144
      %p146 = scmp.eq.s32.totalorder %s31, 0
      %p147 = por %p145, %p146
      %s149 = sadd.s32 %s148, 1
      %p152 = scmp.eq.s32.totalorder %s25, 1
      %p153 = scmp.ne.s32.totalorder %s148, %s150
      %p154 = scmp.eq.s32.totalorder %s25, 0
      %p155 = por %p153, %p154
      %p156 = scmp.ne.s32.totalorder %s148, %s150
      %p157 = scmp.eq.s32.totalorder %s30, 1
      %p158 = por %p156, %p157
      %p159 = scmp.ne.s32.totalorder %s150, %s151
      %p160 = scmp.eq.s32.totalorder %s30, 0
      %p161 = por %p159, %p160
      %p162 = scmp.ne.s32.totalorder %s150, %s151
      %p163 = scmp.eq.s32.totalorder %s31, 1
      %p164 = por %p162, %p163
      %p166 = scmp.ne.s32.totalorder %s151, %s165
      %p167 = scmp.eq.s32.totalorder %s31, 0
      %p168 = por %p166, %p167
      %s170 = sadd.s32 %s169, 1
      %p173 = scmp.eq.s32.totalorder %s25, 1
      %p174 = scmp.ne.s32.totalorder %s169, %s171
      %p175 = scmp.eq.s32.totalorder %s25, 0
      %p176 = por %p174, %p175
      %p177 = scmp.ne.s32.totalorder %s169, %s171
      %p178 = scmp.eq.s32.totalorder %s30, 1
      %p179 = por %p177, %p178
      %p180 = scmp.ne.s32.totalorder %s171, %s172
      %p181 = scmp.eq.s32.totalorder %s30, 0
      %p182 = por %p180, %p181
      %p183 = scmp.ne.s32.totalorder %s171, %s172
      %p184 = scmp.eq.s32.totalorder %s31, 1
      %p185 = por %p183, %p184
      %p187 = scmp.ne.s32.totalorder %s172, %s186
      %p188 = scmp.eq.s32.totalorder %s31, 0
      %p189 = por %p187, %p188
      %s191 = sadd.s32 %s190, 1
      %p194 = scmp.eq.s32.totalorder %s25, 1
      %p195 = scmp.ne.s32.totalorder %s190, %s192
      %p196 = scmp.eq.s32.totalorder %s25, 0
      %p197 = por %p195, %p196
      %p198 = scmp.ne.s32.totalorder %s190, %s192
      %p199 = scmp.eq.s32.totalorder %s30, 1
      %p200 = por %p198, %p199
      %p201 = scmp.ne.s32.totalorder %s192, %s193
      %p202 = scmp.eq.s32.totalorder %s30, 0
      %p203 = por %p201, %p202
      %p204 = scmp.ne.s32.totalorder %s192, %s193
      %p205 = scmp.eq.s32.totalorder %s31, 1
      %p206 = por %p204, %p205
      %p208 = scmp.ne.s32.totalorder %s193, %s207
      %p209 = scmp.eq.s32.totalorder %s31, 0
      %p210 = por %p208, %p209
      %s212 = sadd.s32 %s211, 1
      %p215 = scmp.eq.s32.totalorder %s25, 1
      %p216 = scmp.ne.s32.totalorder %s211, %s213
      %p217 = scmp.eq.s32.totalorder %s25, 0
      %p218 = por %p216, %p217
      %p219 = scmp.ne.s32.totalorder %s211, %s213
      %p220 = scmp.eq.s32.totalorder %s30, 1
      %p221 = por %p219, %p220
      %p222 = scmp.ne.s32.totalorder %s213, %s214
      %p223 = scmp.eq.s32.totalorder %s30, 0
      %p224 = por %p222, %p223
      %p225 = scmp.ne.s32.totalorder %s213, %s214
      %p226 = scmp.eq.s32.totalorder %s31, 1
      %p227 = por %p225, %p226
      %p229 = scmp.ne.s32.totalorder %s214, %s228
      %p230 = scmp.eq.s32.totalorder %s31, 0
      %p231 = por %p229, %p230
      %s233 = sadd.s32 %s232, 1
      %p236 = scmp.eq.s32.totalorder %s25, 1
      %p237 = scmp.ne.s32.totalorder %s232, %s234
      %p238 = scmp.eq.s32.totalorder %s25, 0
      %p239 = por %p237, %p238
      %p240 = scmp.ne.s32.totalorder %s232, %s234
      %p241 = scmp.eq.s32.totalorder %s30, 1
      %p242 = por %p240, %p241
      %p243 = scmp.ne.s32.totalorder %s234, %s235
      %p244 = scmp.eq.s32.totalorder %s30, 0
      %p245 = por %p243, %p244
      %p246 = scmp.ne.s32.totalorder %s234, %s235
      %p247 = scmp.eq.s32.totalorder %s31, 1
      %p248 = por %p246, %p247
      %p250 = scmp.ne.s32.totalorder %s235, %s249
      %p251 = scmp.eq.s32.totalorder %s31, 0
      %p252 = por %p250, %p251
      %s254 = sadd.s32 %s253, 1
      %p257 = scmp.eq.s32.totalorder %s25, 1
      %p258 = scmp.ne.s32.totalorder %s253, %s255
      %p259 = scmp.eq.s32.totalorder %s25, 0
      %p260 = por %p258, %p259
      %p261 = scmp.ne.s32.totalorder %s253, %s255
      %p262 = scmp.eq.s32.totalorder %s30, 1
      %p263 = por %p261, %p262
      %p264 = scmp.ne.s32.totalorder %s255, %s256
      %p265 = scmp.eq.s32.totalorder %s30, 0
      %p266 = por %p264, %p265
      %p267 = scmp.ne.s32.totalorder %s255, %s256
      %p268 = scmp.eq.s32.totalorder %s31, 1
      %p269 = por %p267, %p268
      %p271 = scmp.ne.s32.totalorder %s256, %s270
      %p272 = scmp.eq.s32.totalorder %s31, 0
      %p273 = por %p271, %p272
      %s275 = sadd.s32 %s274, 1
      %p278 = scmp.eq.s32.totalorder %s25, 1
      %p279 = scmp.ne.s32.totalorder %s274, %s276
      %p280 = scmp.eq.s32.totalorder %s25, 0
      %p281 = por %p279, %p280
      %p282 = scmp.ne.s32.totalorder %s274, %s276
      %p283 = scmp.eq.s32.totalorder %s30, 1
      %p284 = por %p282, %p283
      %p285 = scmp.ne.s32.totalorder %s276, %s277
      %p286 = scmp.eq.s32.totalorder %s30, 0
      %p287 = por %p285, %p286
      %p288 = scmp.ne.s32.totalorder %s276, %s277
      %p289 = scmp.eq.s32.totalorder %s31, 1
      %p290 = por %p288, %p289
      %p292 = scmp.ne.s32.totalorder %s277, %s291
      %p293 = scmp.eq.s32.totalorder %s31, 0
      %p294 = por %p292, %p293
      %s296 = sadd.s32 %s295, 1
      %p299 = scmp.eq.s32.totalorder %s25, 1
      %p300 = scmp.ne.s32.totalorder %s295, %s297
      %p301 = scmp.eq.s32.totalorder %s25, 0
      %p302 = por %p300, %p301
      %p303 = scmp.ne.s32.totalorder %s295, %s297
      %p304 = scmp.eq.s32.totalorder %s30, 1
      %p305 = por %p303, %p304
      %p306 = scmp.ne.s32.totalorder %s297, %s298
      %p307 = scmp.eq.s32.totalorder %s30, 0
      %p308 = por %p306, %p307
      %p309 = scmp.ne.s32.totalorder %s297, %s298
      %p310 = scmp.eq.s32.totalorder %s31, 1
      %p311 = por %p309, %p310
      %p313 = scmp.ne.s32.totalorder %s298, %s312
      %p314 = scmp.eq.s32.totalorder %s31, 0
      %p315 = por %p313, %p314
      %s317 = sadd.s32 %s316, 1
      %p320 = scmp.eq.s32.totalorder %s25, 1
      %p321 = scmp.ne.s32.totalorder %s316, %s318
      %p322 = scmp.eq.s32.totalorder %s25, 0
      %p323 = por %p321, %p322
      %p324 = scmp.ne.s32.totalorder %s316, %s318
      %p325 = scmp.eq.s32.totalorder %s30, 1
      %p326 = por %p324, %p325
      %p327 = scmp.ne.s32.totalorder %s318, %s319
      %p328 = scmp.eq.s32.totalorder %s30, 0
      %p329 = por %p327, %p328
      %p330 = scmp.ne.s32.totalorder %s318, %s319
      %p331 = scmp.eq.s32.totalorder %s31, 1
      %p332 = por %p330, %p331
      %p334 = scmp.ne.s32.totalorder %s319, %s333
      %p335 = scmp.eq.s32.totalorder %s31, 0
      %p336 = por %p334, %p335
      %s337 = ssub.s32 %s25, %s32
      %p338 = scmp.eq.s32.totalorder %s337, 0
      %s340 = sadd.s32 %s339, 1
      %s341 = scalar_select %p338, %s339, %s340
      %p344 = pneg %p338
      %p345 = scmp.eq.s32.totalorder %s25, 1
      %p346 = por %p344, %p345
      %p347 = scmp.ne.s32.totalorder %s339, %s342
      %p348 = scmp.eq.s32.totalorder %s25, 0
      %p349 = por %p347, %p348
      %p350 = scmp.ne.s32.totalorder %s339, %s342
      %p351 = scmp.eq.s32.totalorder %s30, 1
      %p352 = por %p350, %p351
      %p353 = scmp.ne.s32.totalorder %s342, %s343
      %p354 = scmp.eq.s32.totalorder %s30, 0
      %p355 = por %p353, %p354
      %p356 = scmp.ne.s32.totalorder %s342, %s343
      %p357 = scmp.eq.s32.totalorder %s31, 1
      %p358 = por %p356, %p357
      %p360 = scmp.ne.s32.totalorder %s343, %s359
      %p361 = scmp.eq.s32.totalorder %s31, 0
      %p362 = por %p360, %p361
      %p363 = scmp.le.s32.totalorder 1, %s25
      %p364 = scmp.lt.s32.totalorder %s25, 3
      %p365 = pnand %p363, %p364
      %p366 = pneg %p365
      // Predicated region
      $region9: #{tpu_custom_call.1} parent=5 // pred_check
        _
      $region10: #{tpu_custom_call.1} parent=5 // pred_check_branch
        %368 = sbr.rel (%p365) target = $region12
      $region11: #{tpu_custom_call.1} parent=5 // pred_region
        %s369 = ssub.s32 %s25, 1
        // Predicated region
        $region13: #{tpu_custom_call.1} parent=11 // pred_check
          %p370 = pneg %p98
        $region14: #{tpu_custom_call.1} parent=11 // pred_check_branch
          %372 = sbr.rel (%p370) target = $region16
        $region15: #{tpu_custom_call.1} parent=11 // pred_region
          _
        $region16: #{tpu_custom_call.1} parent=11 // pred_fallthru
          _
        // Predicated region
        $region17: #{tpu_custom_call.1} parent=11 // pred_check
          %p373 = pneg %p119
        $region18: #{tpu_custom_call.1} parent=11 // pred_check_branch
          %375 = sbr.rel (%p373) target = $region20
        $region19: #{tpu_custom_call.1} parent=11 // pred_region
          _
        $region20: #{tpu_custom_call.1} parent=11 // pred_fallthru
          _
        // Predicated region
        $region21: #{tpu_custom_call.1} parent=11 // pred_check
          %p376 = pneg %p140
        $region22: #{tpu_custom_call.1} parent=11 // pred_check_branch
          %378 = sbr.rel (%p376) target = $region24
        $region23: #{tpu_custom_call.1} parent=11 // pred_region
          _
        $region24: #{tpu_custom_call.1} parent=11 // pred_fallthru
          _
        // Predicated region
        $region25: #{tpu_custom_call.1} parent=11 // pred_check
          %p379 = pneg %p161
        $region26: #{tpu_custom_call.1} parent=11 // pred_check_branch
          %381 = sbr.rel (%p379) target = $region28
        $region27: #{tpu_custom_call.1} parent=11 // pred_region
          _
        $region28: #{tpu_custom_call.1} parent=11 // pred_fallthru
          _
        // Predicated region
        $region29: #{tpu_custom_call.1} parent=11 // pred_check
          %p382 = pneg %p182
        $region30: #{tpu_custom_call.1} parent=11 // pred_check_branch
          %384 = sbr.rel (%p382) target = $region32
        $region31: #{tpu_custom_call.1} parent=11 // pred_region
          _
        $region32: #{tpu_custom_call.1} parent=11 // pred_fallthru
          _
        // Predicated region
        $region33: #{tpu_custom_call.1} parent=11 // pred_check
          %p385 = pneg %p203
        $region34: #{tpu_custom_call.1} parent=11 // pred_check_branch
          %387 = sbr.rel (%p385) target = $region36
        $region35: #{tpu_custom_call.1} parent=11 // pred_region
          _
        $region36: #{tpu_custom_call.1} parent=11 // pred_fallthru
          _
        // Predicated region
        $region37: #{tpu_custom_call.1} parent=11 // pred_check
          %p388 = pneg %p224
        $region38: #{tpu_custom_call.1} parent=11 // pred_check_branch
          %390 = sbr.rel (%p388) target = $region40
        $region39: #{tpu_custom_call.1} parent=11 // pred_region
          _
        $region40: #{tpu_custom_call.1} parent=11 // pred_fallthru
          _
        // Predicated region
        $region41: #{tpu_custom_call.1} parent=11 // pred_check
          %p391 = pneg %p245
        $region42: #{tpu_custom_call.1} parent=11 // pred_check_branch
          %393 = sbr.rel (%p391) target = $region44
        $region43: #{tpu_custom_call.1} parent=11 // pred_region
          _
        $region44: #{tpu_custom_call.1} parent=11 // pred_fallthru
          _
        // Predicated region
        $region45: #{tpu_custom_call.1} parent=11 // pred_check
          %p394 = pneg %p266
        $region46: #{tpu_custom_call.1} parent=11 // pred_check_branch
          %396 = sbr.rel (%p394) target = $region48
        $region47: #{tpu_custom_call.1} parent=11 // pred_region
          _
        $region48: #{tpu_custom_call.1} parent=11 // pred_fallthru
          _
        // Predicated region
        $region49: #{tpu_custom_call.1} parent=11 // pred_check
          %p397 = pneg %p287
        $region50: #{tpu_custom_call.1} parent=11 // pred_check_branch
          %399 = sbr.rel (%p397) target = $region52
        $region51: #{tpu_custom_call.1} parent=11 // pred_region
          _
        $region52: #{tpu_custom_call.1} parent=11 // pred_fallthru
          _
        // Predicated region
        $region53: #{tpu_custom_call.1} parent=11 // pred_check
          %p400 = pneg %p308
        $region54: #{tpu_custom_call.1} parent=11 // pred_check_branch
          %402 = sbr.rel (%p400) target = $region56
        $region55: #{tpu_custom_call.1} parent=11 // pred_region
          _
        $region56: #{tpu_custom_call.1} parent=11 // pred_fallthru
          _
        // Predicated region
        $region57: #{tpu_custom_call.1} parent=11 // pred_check
          %p403 = pneg %p329
        $region58: #{tpu_custom_call.1} parent=11 // pred_check_branch
          %405 = sbr.rel (%p403) target = $region60
        $region59: #{tpu_custom_call.1} parent=11 // pred_region
          _
        $region60: #{tpu_custom_call.1} parent=11 // pred_fallthru
          _
      $region12: #{tpu_custom_call.1} parent=5 // pred_fallthru
        _
      %p406 = scmp.lt.s32.totalorder %s25, 2
      // Predicated region
      $region61: #{tpu_custom_call.1} parent=5 // pred_check
        %p407 = pneg %p406
      $region62: #{tpu_custom_call.1} parent=5 // pred_check_branch
        %409 = sbr.rel (%p407) target = $region64
      $region63: #{tpu_custom_call.1} parent=5 // pred_region
        // Predicated region
        $region65: #{tpu_custom_call.1} parent=63 // pred_check
          %p410 = pneg %p45
        $region66: #{tpu_custom_call.1} parent=63 // pred_check_branch
          %412 = sbr.rel (%p410) target = $region68
        $region67: #{tpu_custom_call.1} parent=63 // pred_region
          %s413 = smul.u32 2, %s25
          %p414 = scmp.lt.s32.totalorder %s413, 3
          %s415 = scalar_select %p414, %s413, 3
          %s416 = scalar_lea.vmem %s0, %s415
          %s417 = smul.u32 2, %s25
        $region68: #{tpu_custom_call.1} parent=63 // pred_fallthru
          _
        // Predicated region
        $region69: #{tpu_custom_call.1} parent=63 // pred_check
          %p418 = pneg %p71
        $region70: #{tpu_custom_call.1} parent=63 // pred_check_branch
          %420 = sbr.rel (%p418) target = $region72
        $region71: #{tpu_custom_call.1} parent=63 // pred_region
          %s421 = smul.u32 2, %s25
          %p422 = scmp.lt.s32.totalorder %s421, 3
          %s423 = scalar_select %p422, %s421, 3
          %s424 = scalar_lea.vmem %s1, %s423
          %s425 = smul.u32 2, %s25
        $region72: #{tpu_custom_call.1} parent=63 // pred_fallthru
          _
      $region64: #{tpu_custom_call.1} parent=5 // pred_fallthru
        _
      %p426 = scmp.le.s32.totalorder 1, %s25
      %p427 = scmp.lt.s32.totalorder %s25, 3
      %p428 = pnand %p426, %p427
      %p429 = pneg %p428
      // Predicated region
      $region73: #{tpu_custom_call.1} parent=5 // pred_check
        _
      $region74: #{tpu_custom_call.1} parent=5 // pred_check_branch
        %431 = sbr.rel (%p428) target = $region76
      $region75: #{tpu_custom_call.1} parent=5 // pred_region
        %s432 = ssub.s32 %s25, 1
        %s433 = smul.u32 2, %s30
        %p434 = scmp.lt.s32.totalorder %s433, 3
        %s435 = scalar_select %p434, %s433, 3
        %s436 = scalar_lea.vmem %s0, %s435
        %p437 = pneg %p51
        %p438 = pneg %p48
        %s439 = smul.u32 2, %s30
        %p440 = scmp.lt.s32.totalorder %s439, 3
        %s441 = scalar_select %p440, %s439, 3
        %s442 = scalar_lea.vmem %s1, %s441
        %p443 = pneg %p77
        %p444 = pneg %p74
        %p445 = pneg %p98
        %p446 = pneg %p95
        %p447 = pneg %p119
        %p448 = pneg %p116
        %p449 = pneg %p140
        %p450 = pneg %p137
        %p451 = pneg %p161
        %p452 = pneg %p158
        %p453 = pneg %p182
        %p454 = pneg %p179
        %p455 = pneg %p203
        %p456 = pneg %p200
        %p457 = pneg %p224
        %p458 = pneg %p221
        %p459 = pneg %p245
        %p460 = pneg %p242
        %p461 = pneg %p266
        %p462 = pneg %p263
        %p463 = pneg %p287
        %p464 = pneg %p284
        %p465 = pneg %p308
        %p466 = pneg %p305
        %p467 = pneg %p329
        %p468 = pneg %p326
        %p469 = pneg %p355
        %p470 = pneg %p352
        %s471 = sand.u32 %s342, 1
        %s472 = scalar_lea.sflag [#allocation4], %s471
        %s473 = sand.u32 %s342, 1
        %s474 = smul.addr %s473, 2
        %s475 = scalar_lea.vmem [#allocation3], %s474
        %s476 = smul.u32 2, %s30
        %p477 = scmp.lt.s32.totalorder %s476, 3
        %s478 = scalar_select %p477, %s476, 3
        %s479 = scalar_lea.vmem %s0, %s478
        %s480 = smul.u32 2, %s30
        %s481 = smul.u32 2, %s30
        %p482 = scmp.lt.s32.totalorder %s481, 3
        %s483 = scalar_select %p482, %s481, 3
        %s484 = scalar_lea.vmem %s1, %s483
        %s485 = smul.u32 2, %s30
        %s486 = smul.u32 2, %s30
        %v487 = vld [vmem:[%s479] sm:$0x3]
        %v488 = vld [vmem:[%s484] sm:$0x3]
        %v489 = vlaneseq
        %v490 = vshrl.u32 %v489, 7
        %v491 = vadd.s32 %v490, 8
        %v492 = vadd.s32 %v490, 16
        %v493 = vadd.s32 %v490, 24
        %v494 = vadd.s32 %v490, 32
        %v495 = vadd.s32 %v490, 40
        %v496 = vadd.s32 %v490, 48
        %v497 = vadd.s32 %v490, 56
        %v498 = vadd.s32 %v490, 64
        %v499 = vadd.s32 %v490, 72
        %v500 = vadd.s32 %v490, 80
        %v501 = vadd.s32 %v490, 88
        %v502 = vadd.s32 %v490, 96
        %v503 = vadd.s32 %v490, 104
        %v504 = vadd.s32 %v490, 112
        %v505 = vadd.s32 %v490, 120
        %v506 = vlaneseq
        %v507 = vshrl.u32 %v506, 7
        %v508 = vsub.s32 0, %v507
        %v509 = vrot.slane %v487, %v508
        %v510 = vlaneseq
        %v511 = vshrl.u32 %v510, 7
        %v512 = vsub.s32 1, %v511
        %v513 = vrot.slane %v487, %v512
        %vm514 = vcmp.eq.s32.totalorder %v490, %v509
        %vm515 = vcmp.eq.s32.totalorder %v490, %v513
        %vm516 = vcmp.eq.s32.totalorder %v491, %v509
        %vm517 = vcmp.eq.s32.totalorder %v491, %v513
        %vm518 = vcmp.eq.s32.totalorder %v492, %v509
        %vm519 = vcmp.eq.s32.totalorder %v492, %v513
        %vm520 = vcmp.eq.s32.totalorder %v493, %v509
        %vm521 = vcmp.eq.s32.totalorder %v493, %v513
        %vm522 = vcmp.eq.s32.totalorder %v494, %v509
        %vm523 = vcmp.eq.s32.totalorder %v494, %v513
        %vm524 = vcmp.eq.s32.totalorder %v495, %v509
        %vm525 = vcmp.eq.s32.totalorder %v495, %v513
        %vm526 = vcmp.eq.s32.totalorder %v496, %v509
        %vm527 = vcmp.eq.s32.totalorder %v496, %v513
        %vm528 = vcmp.eq.s32.totalorder %v497, %v509
        %vm529 = vcmp.eq.s32.totalorder %v497, %v513
        %vm530 = vcmp.eq.s32.totalorder %v498, %v509
        %vm531 = vcmp.eq.s32.totalorder %v498, %v513
        %vm532 = vcmp.eq.s32.totalorder %v499, %v509
        %vm533 = vcmp.eq.s32.totalorder %v499, %v513
        %vm534 = vcmp.eq.s32.totalorder %v500, %v509
        %vm535 = vcmp.eq.s32.totalorder %v500, %v513
        %vm536 = vcmp.eq.s32.totalorder %v501, %v509
        %vm537 = vcmp.eq.s32.totalorder %v501, %v513
        %vm538 = vcmp.eq.s32.totalorder %v502, %v509
        %vm539 = vcmp.eq.s32.totalorder %v502, %v513
        %vm540 = vcmp.eq.s32.totalorder %v503, %v509
        %vm541 = vcmp.eq.s32.totalorder %v503, %v513
        %vm542 = vcmp.eq.s32.totalorder %v504, %v509
        %vm543 = vcmp.eq.s32.totalorder %v504, %v513
        %vm544 = vcmp.eq.s32.totalorder %v505, %v509
        %vm545 = vcmp.eq.s32.totalorder %v505, %v513
        %v546 = vsel %vm514, 1, 0
        %v547 = vsel %vm515, 1, 0
        %v548 = vsel %vm516, 1, 0
        %v549 = vsel %vm517, 1, 0
        %v550 = vsel %vm518, 1, 0
        %v551 = vsel %vm519, 1, 0
        %v552 = vsel %vm520, 1, 0
        %v553 = vsel %vm521, 1, 0
        %v554 = vsel %vm522, 1, 0
        %v555 = vsel %vm523, 1, 0
        %v556 = vsel %vm524, 1, 0
        %v557 = vsel %vm525, 1, 0
        %v558 = vsel %vm526, 1, 0
        %v559 = vsel %vm527, 1, 0
        %v560 = vsel %vm528, 1, 0
        %v561 = vsel %vm529, 1, 0
        %v562 = vsel %vm530, 1, 0
        %v563 = vsel %vm531, 1, 0
        %v564 = vsel %vm532, 1, 0
        %v565 = vsel %vm533, 1, 0
        %v566 = vsel %vm534, 1, 0
        %v567 = vsel %vm535, 1, 0
        %v568 = vsel %vm536, 1, 0
        %v569 = vsel %vm537, 1, 0
        %v570 = vsel %vm538, 1, 0
        %v571 = vsel %vm539, 1, 0
        %v572 = vsel %vm540, 1, 0
        %v573 = vsel %vm541, 1, 0
        %v574 = vsel %vm542, 1, 0
        %v575 = vsel %vm543, 1, 0
        %v576 = vsel %vm544, 1, 0
        %v577 = vsel %vm545, 1, 0
        %v578 = vcvt.s32.f32 %v546
        %v579 = vcvt.s32.f32 %v547
        %v580 = vcvt.s32.f32 %v548
        %v581 = vcvt.s32.f32 %v549
        %v582 = vcvt.s32.f32 %v550
        %v583 = vcvt.s32.f32 %v551
        %v584 = vcvt.s32.f32 %v552
        %v585 = vcvt.s32.f32 %v553
        %v586 = vcvt.s32.f32 %v554
        %v587 = vcvt.s32.f32 %v555
        %v588 = vcvt.s32.f32 %v556
        %v589 = vcvt.s32.f32 %v557
        %v590 = vcvt.s32.f32 %v558
        %v591 = vcvt.s32.f32 %v559
        %v592 = vcvt.s32.f32 %v560
        %v593 = vcvt.s32.f32 %v561
        %v594 = vcvt.s32.f32 %v562
        %v595 = vcvt.s32.f32 %v563
        %v596 = vcvt.s32.f32 %v564
        %v597 = vcvt.s32.f32 %v565
        %v598 = vcvt.s32.f32 %v566
        %v599 = vcvt.s32.f32 %v567
        %v600 = vcvt.s32.f32 %v568
        %v601 = vcvt.s32.f32 %v569
        %v602 = vcvt.s32.f32 %v570
        %v603 = vcvt.s32.f32 %v571
        %v604 = vcvt.s32.f32 %v572
        %v605 = vcvt.s32.f32 %v573
        %v606 = vcvt.s32.f32 %v574
        %v607 = vcvt.s32.f32 %v575
        %v608 = vcvt.s32.f32 %v576
        %v609 = vcvt.s32.f32 %v577
        %v610 = vadd.s32 %v490, 128
        %v611 = vadd.s32 %v490, 136
        %v612 = vadd.s32 %v490, 144
        %v613 = vadd.s32 %v490, 152
        %v614 = vadd.s32 %v490, 160
        %v615 = vadd.s32 %v490, 168
        %v616 = vadd.s32 %v490, 176
        %v617 = vadd.s32 %v490, 184
        %v618 = vlaneseq
        %v619 = vshrl.u32 %v618, 7
        %v620 = vsub.s32 0, %v619
        %v621 = vrot.slane %v488, %v620
        %v622 = vlaneseq
        %v623 = vshrl.u32 %v622, 7
        %v624 = vsub.s32 1, %v623
        %v625 = vrot.slane %v488, %v624
        %vm626 = vcmp.eq.s32.totalorder %v490, %v621
        %vm627 = vcmp.eq.s32.totalorder %v490, %v625
        %vm628 = vcmp.eq.s32.totalorder %v491, %v621
        %vm629 = vcmp.eq.s32.totalorder %v491, %v625
        %vm630 = vcmp.eq.s32.totalorder %v492, %v621
        %vm631 = vcmp.eq.s32.totalorder %v492, %v625
        %vm632 = vcmp.eq.s32.totalorder %v493, %v621
        %vm633 = vcmp.eq.s32.totalorder %v493, %v625
        %vm634 = vcmp.eq.s32.totalorder %v494, %v621
        %vm635 = vcmp.eq.s32.totalorder %v494, %v625
        %vm636 = vcmp.eq.s32.totalorder %v495, %v621
        %vm637 = vcmp.eq.s32.totalorder %v495, %v625
        %vm638 = vcmp.eq.s32.totalorder %v496, %v621
        %vm639 = vcmp.eq.s32.totalorder %v496, %v625
        %vm640 = vcmp.eq.s32.totalorder %v497, %v621
        %vm641 = vcmp.eq.s32.totalorder %v497, %v625
        %vm642 = vcmp.eq.s32.totalorder %v498, %v621
        %vm643 = vcmp.eq.s32.totalorder %v498, %v625
        %vm644 = vcmp.eq.s32.totalorder %v499, %v621
        %vm645 = vcmp.eq.s32.totalorder %v499, %v625
        %vm646 = vcmp.eq.s32.totalorder %v500, %v621
        %vm647 = vcmp.eq.s32.totalorder %v500, %v625
        %vm648 = vcmp.eq.s32.totalorder %v501, %v621
        %vm649 = vcmp.eq.s32.totalorder %v501, %v625
        %vm650 = vcmp.eq.s32.totalorder %v502, %v621
        %vm651 = vcmp.eq.s32.totalorder %v502, %v625
        %vm652 = vcmp.eq.s32.totalorder %v503, %v621
        %vm653 = vcmp.eq.s32.totalorder %v503, %v625
        %vm654 = vcmp.eq.s32.totalorder %v504, %v621
        %vm655 = vcmp.eq.s32.totalorder %v504, %v625
        %vm656 = vcmp.eq.s32.totalorder %v505, %v621
        %vm657 = vcmp.eq.s32.totalorder %v505, %v625
        %vm658 = vcmp.eq.s32.totalorder %v610, %v621
        %vm659 = vcmp.eq.s32.totalorder %v610, %v625
        %vm660 = vcmp.eq.s32.totalorder %v611, %v621
        %vm661 = vcmp.eq.s32.totalorder %v611, %v625
        %vm662 = vcmp.eq.s32.totalorder %v612, %v621
        %vm663 = vcmp.eq.s32.totalorder %v612, %v625
        %vm664 = vcmp.eq.s32.totalorder %v613, %v621
        %vm665 = vcmp.eq.s32.totalorder %v613, %v625
        %vm666 = vcmp.eq.s32.totalorder %v614, %v621
        %vm667 = vcmp.eq.s32.totalorder %v614, %v625
        %vm668 = vcmp.eq.s32.totalorder %v615, %v621
        %vm669 = vcmp.eq.s32.totalorder %v615, %v625
        %vm670 = vcmp.eq.s32.totalorder %v616, %v621
        %vm671 = vcmp.eq.s32.totalorder %v616, %v625
        %vm672 = vcmp.eq.s32.totalorder %v617, %v621
        %vm673 = vcmp.eq.s32.totalorder %v617, %v625
        %v674 = vsel %vm626, 1, 0
        %v675 = vsel %vm627, 1, 0
        %v676 = vsel %vm628, 1, 0
        %v677 = vsel %vm629, 1, 0
        %v678 = vsel %vm630, 1, 0
        %v679 = vsel %vm631, 1, 0
        %v680 = vsel %vm632, 1, 0
        %v681 = vsel %vm633, 1, 0
        %v682 = vsel %vm634, 1, 0
        %v683 = vsel %vm635, 1, 0
        %v684 = vsel %vm636, 1, 0
        %v685 = vsel %vm637, 1, 0
        %v686 = vsel %vm638, 1, 0
        %v687 = vsel %vm639, 1, 0
        %v688 = vsel %vm640, 1, 0
        %v689 = vsel %vm641, 1, 0
        %v690 = vsel %vm642, 1, 0
        %v691 = vsel %vm643, 1, 0
        %v692 = vsel %vm644, 1, 0
        %v693 = vsel %vm645, 1, 0
        %v694 = vsel %vm646, 1, 0
        %v695 = vsel %vm647, 1, 0
        %v696 = vsel %vm648, 1, 0
        %v697 = vsel %vm649, 1, 0
        %v698 = vsel %vm650, 1, 0
        %v699 = vsel %vm651, 1, 0
        %v700 = vsel %vm652, 1, 0
        %v701 = vsel %vm653, 1, 0
        %v702 = vsel %vm654, 1, 0
        %v703 = vsel %vm655, 1, 0
        %v704 = vsel %vm656, 1, 0
        %v705 = vsel %vm657, 1, 0
        %v706 = vsel %vm658, 1, 0
        %v707 = vsel %vm659, 1, 0
        %v708 = vsel %vm660, 1, 0
        %v709 = vsel %vm661, 1, 0
        %v710 = vsel %vm662, 1, 0
        %v711 = vsel %vm663, 1, 0
        %v712 = vsel %vm664, 1, 0
        %v713 = vsel %vm665, 1, 0
        %v714 = vsel %vm666, 1, 0
        %v715 = vsel %vm667, 1, 0
        %v716 = vsel %vm668, 1, 0
        %v717 = vsel %vm669, 1, 0
        %v718 = vsel %vm670, 1, 0
        %v719 = vsel %vm671, 1, 0
        %v720 = vsel %vm672, 1, 0
        %v721 = vsel %vm673, 1, 0
        %v722 = vcvt.s32.f32 %v674
        %v723 = vcvt.s32.f32 %v675
        %v724 = vcvt.s32.f32 %v676
        %v725 = vcvt.s32.f32 %v677
        %v726 = vcvt.s32.f32 %v678
        %v727 = vcvt.s32.f32 %v679
        %v728 = vcvt.s32.f32 %v680
        %v729 = vcvt.s32.f32 %v681
        %v730 = vcvt.s32.f32 %v682
        %v731 = vcvt.s32.f32 %v683
        %v732 = vcvt.s32.f32 %v684
        %v733 = vcvt.s32.f32 %v685
        %v734 = vcvt.s32.f32 %v686
        %v735 = vcvt.s32.f32 %v687
        %v736 = vcvt.s32.f32 %v688
        %v737 = vcvt.s32.f32 %v689
        %v738 = vcvt.s32.f32 %v690
        %v739 = vcvt.s32.f32 %v691
        %v740 = vcvt.s32.f32 %v692
        %v741 = vcvt.s32.f32 %v693
        %v742 = vcvt.s32.f32 %v694
        %v743 = vcvt.s32.f32 %v695
        %v744 = vcvt.s32.f32 %v696
        %v745 = vcvt.s32.f32 %v697
        %v746 = vcvt.s32.f32 %v698
        %v747 = vcvt.s32.f32 %v699
        %v748 = vcvt.s32.f32 %v700
        %v749 = vcvt.s32.f32 %v701
        %v750 = vcvt.s32.f32 %v702
        %v751 = vcvt.s32.f32 %v703
        %v752 = vcvt.s32.f32 %v704
        %v753 = vcvt.s32.f32 %v705
        %v754 = vcvt.s32.f32 %v706
        %v755 = vcvt.s32.f32 %v707
        %v756 = vcvt.s32.f32 %v708
        %v757 = vcvt.s32.f32 %v709
        %v758 = vcvt.s32.f32 %v710
        %v759 = vcvt.s32.f32 %v711
        %v760 = vcvt.s32.f32 %v712
        %v761 = vcvt.s32.f32 %v713
        %v762 = vcvt.s32.f32 %v714
        %v763 = vcvt.s32.f32 %v715
        %v764 = vcvt.s32.f32 %v716
        %v765 = vcvt.s32.f32 %v717
        %v766 = vcvt.s32.f32 %v718
        %v767 = vcvt.s32.f32 %v719
        %v768 = vcvt.s32.f32 %v720
        %v769 = vcvt.s32.f32 %v721
        %v770 = vld [vmem:[%s2] sm:$0xff]
        %v771 = vld [vmem:[%s2 + $0x8] sm:$0xff]
        %v772 = vld [vmem:[%s2 + $0x10] sm:$0xff]
        %v773 = vld [vmem:[%s2 + $0x18] sm:$0xff]
        %v774 = vld [vmem:[%s2 + $0x20] sm:$0xff]
        %v775 = vld [vmem:[%s2 + $0x28] sm:$0xff]
        %v776 = vld [vmem:[%s2 + $0x30] sm:$0xff]
        %v777 = vld [vmem:[%s2 + $0x38] sm:$0xff]
        %v778 = vld [vmem:[%s2 + $0x40] sm:$0xff]
        %v779 = vld [vmem:[%s2 + $0x48] sm:$0xff]
        %v780 = vld [vmem:[%s2 + $0x50] sm:$0xff]
        %v781 = vld [vmem:[%s2 + $0x58] sm:$0xff]
        %v782 = vld [vmem:[%s2 + $0x60] sm:$0xff]
        %v783 = vld [vmem:[%s2 + $0x68] sm:$0xff]
        %v784 = vld [vmem:[%s2 + $0x70] sm:$0xff]
        %v785 = vld [vmem:[%s2 + $0x78] sm:$0xff]
        %786 = vmatprep.subr.mxu0 %v579
        %787 = vmatpush1.msra.mxu0 %v578
        %788 = vmatprep.subr.mxu0 %v581
        %789 = vmatpush1.msra.mxu0 %v580
        %790 = vmatprep.subr.mxu0 %v583
        %791 = vmatpush1.msra.mxu0 %v582
        %792 = vmatprep.subr.mxu0 %v585
        %793 = vmatpush1.msra.mxu0 %v584
        %794 = vmatprep.subr.mxu0 %v587
        %795 = vmatpush1.msra.mxu0 %v586
        %796 = vmatprep.subr.mxu0 %v589
        %797 = vmatpush1.msra.mxu0 %v588
        %798 = vmatprep.subr.mxu0 %v591
        %799 = vmatpush1.msra.mxu0 %v590
        %800 = vmatprep.subr.mxu0 %v593
        %801 = vmatpush1.msra.mxu0 %v592
        %802 = vmatprep.subr.mxu0 %v595
        %803 = vmatpush1.msra.mxu0 %v594
        %804 = vmatprep.subr.mxu0 %v597
        %805 = vmatpush1.msra.mxu0 %v596
        %806 = vmatprep.subr.mxu0 %v599
        %807 = vmatpush1.msra.mxu0 %v598
        %808 = vmatprep.subr.mxu0 %v601
        %809 = vmatpush1.msra.mxu0 %v600
        %810 = vmatprep.subr.mxu0 %v603
        %811 = vmatpush1.msra.mxu0 %v602
        %812 = vmatprep.subr.mxu0 %v605
        %813 = vmatpush1.msra.mxu0 %v604
        %814 = vmatprep.subr.mxu0 %v607
        %815 = vmatpush1.msra.mxu0 %v606
        %816 = vmatprep.subr.mxu0 %v609
        %817 = vmatpush1.msra.mxu0 %v608
        %818 = vmatprep.subr.mxu0 0.0
        %819 = vmatpush1.msra.mxu0 0.0
        %820 = vmatprep.subr.mxu0 0.0
        %821 = vmatpush1.msra.mxu0 0.0
        %822 = vmatprep.subr.mxu0 0.0
        %823 = vmatpush1.msra.mxu0 0.0
        %824 = vmatprep.subr.mxu0 0.0
        %825 = vmatpush1.msra.mxu0 0.0
        %826 = vmatprep.subr.mxu0 0.0
        %827 = vmatpush1.msra.mxu0 0.0
        %828 = vmatprep.subr.mxu0 0.0
        %829 = vmatpush1.msra.mxu0 0.0
        %830 = vmatprep.subr.mxu0 0.0
        %831 = vmatpush1.msra.mxu0 0.0
        %832 = vmatprep.subr.mxu0 0.0
        %833 = vmatpush1.msra.mxu0 0.0
        %834 = vmatprep.subr.mxu0 0.0
        %835 = vmatpush1.msra.mxu0 0.0
        %836 = vmatprep.subr.mxu0 0.0
        %837 = vmatpush1.msra.mxu0 0.0
        %838 = vmatprep.subr.mxu0 0.0
        %839 = vmatpush1.msra.mxu0 0.0
        %840 = vmatprep.subr.mxu0 0.0
        %841 = vmatpush1.msra.mxu0 0.0
        %842 = vmatprep.subr.mxu0 0.0
        %843 = vmatpush1.msra.mxu0 0.0
        %844 = vmatprep.subr.mxu0 0.0
        %845 = vmatpush1.msra.mxu0 0.0
        %846 = vmatprep.subr.mxu0 0.0
        %847 = vmatpush1.msra.mxu0 0.0
        %848 = vmatprep.subr.mxu0 0.0
        %849 = vmatpush1.msra.mxu0 0.0
        %850 = vmatprep.mubr.f32.mxu0 0.0
        %851 = vmatmul.mubr.f32.gmra.mrb[0].mxu0 %v770
        %v852 = vpop.f32.mrb[0].mxu0
        %v853 = vadd.f32 0.0, %v852
        %v854 = vpop.f32.mrb[0].mxu0
        %v855 = vadd.f32 0.0, %v854
        %856 = vmatprep.mubr.f32.mxu0 0.0
        %857 = vmatmul.mubr.f32.gmra.mrb[0].mxu0 %v771
        %v858 = vpop.f32.mrb[0].mxu0
        %v859 = vadd.f32 0.0, %v858
        %v860 = vpop.f32.mrb[0].mxu0
        %v861 = vadd.f32 0.0, %v860
        %862 = vmatprep.mubr.f32.mxu0 0.0
        %863 = vmatmul.mubr.f32.gmra.mrb[0].mxu0 %v772
        %v864 = vpop.f32.mrb[0].mxu0
        %v865 = vadd.f32 0.0, %v864
        %v866 = vpop.f32.mrb[0].mxu0
        %v867 = vadd.f32 0.0, %v866
        %868 = vmatprep.mubr.f32.mxu0 0.0
        %869 = vmatmul.mubr.f32.gmra.mrb[0].mxu0 %v773
        %v870 = vpop.f32.mrb[0].mxu0
        %v871 = vadd.f32 0.0, %v870
        %v872 = vpop.f32.mrb[0].mxu0
        %v873 = vadd.f32 0.0, %v872
        %874 = vmatprep.mubr.f32.mxu0 0.0
        %875 = vmatmul.mubr.f32.gmra.mrb[0].mxu0 %v774
        %v876 = vpop.f32.mrb[0].mxu0
        %v877 = vadd.f32 0.0, %v876
        %v878 = vpop.f32.mrb[0].mxu0
        %v879 = vadd.f32 0.0, %v878
        %880 = vmatprep.mubr.f32.mxu0 0.0
        %881 = vmatmul.mubr.f32.gmra.mrb[0].mxu0 %v775
        %v882 = vpop.f32.mrb[0].mxu0
        %v883 = vadd.f32 0.0, %v882
        %v884 = vpop.f32.mrb[0].mxu0
        %v885 = vadd.f32 0.0, %v884
        %886 = vmatprep.mubr.f32.mxu0 0.0
        %887 = vmatmul.mubr.f32.gmra.mrb[0].mxu0 %v776
        %v888 = vpop.f32.mrb[0].mxu0
        %v889 = vadd.f32 0.0, %v888
        %v890 = vpop.f32.mrb[0].mxu0
        %v891 = vadd.f32 0.0, %v890
        %892 = vmatprep.mubr.f32.mxu0 0.0
        %893 = vmatmul.mubr.f32.gmra.mrb[0].mxu0 %v777
        %v894 = vpop.f32.mrb[0].mxu0
        %v895 = vadd.f32 0.0, %v894
        %v896 = vpop.f32.mrb[0].mxu0
        %v897 = vadd.f32 0.0, %v896
        %898 = vmatprep.mubr.f32.mxu0 0.0
        %899 = vmatmul.mubr.f32.gmra.mrb[0].mxu0 %v778
        %v900 = vpop.f32.mrb[0].mxu0
        %v901 = vadd.f32 0.0, %v900
        %v902 = vpop.f32.mrb[0].mxu0
        %v903 = vadd.f32 0.0, %v902
        %904 = vmatprep.mubr.f32.mxu0 0.0
        %905 = vmatmul.mubr.f32.gmra.mrb[0].mxu0 %v779
        %v906 = vpop.f32.mrb[0].mxu0
        %v907 = vadd.f32 0.0, %v906
        %v908 = vpop.f32.mrb[0].mxu0
        %v909 = vadd.f32 0.0, %v908
        %910 = vmatprep.mubr.f32.mxu0 0.0
        %911 = vmatmul.mubr.f32.gmra.mrb[0].mxu0 %v780
        %v912 = vpop.f32.mrb[0].mxu0
        %v913 = vadd.f32 0.0, %v912
        %v914 = vpop.f32.mrb[0].mxu0
        %v915 = vadd.f32 0.0, %v914
        %916 = vmatprep.mubr.f32.mxu0 0.0
        %917 = vmatmul.mubr.f32.gmra.mrb[0].mxu0 %v781
        %v918 = vpop.f32.mrb[0].mxu0
        %v919 = vadd.f32 0.0, %v918
        %v920 = vpop.f32.mrb[0].mxu0
        %v921 = vadd.f32 0.0, %v920
        %922 = vmatprep.mubr.f32.mxu0 0.0
        %923 = vmatmul.mubr.f32.gmra.mrb[0].mxu0 %v782
        %v924 = vpop.f32.mrb[0].mxu0
        %v925 = vadd.f32 0.0, %v924
        %v926 = vpop.f32.mrb[0].mxu0
        %v927 = vadd.f32 0.0, %v926
        %928 = vmatprep.mubr.f32.mxu0 0.0
        %929 = vmatmul.mubr.f32.gmra.mrb[0].mxu0 %v783
        %v930 = vpop.f32.mrb[0].mxu0
        %v931 = vadd.f32 0.0, %v930
        %v932 = vpop.f32.mrb[0].mxu0
        %v933 = vadd.f32 0.0, %v932
        %934 = vmatprep.mubr.f32.mxu0 0.0
        %935 = vmatmul.mubr.f32.gmra.mrb[0].mxu0 %v784
        %v936 = vpop.f32.mrb[0].mxu0
        %v937 = vadd.f32 0.0, %v936
        %v938 = vpop.f32.mrb[0].mxu0
        %v939 = vadd.f32 0.0, %v938
        %940 = vmatprep.mubr.f32.mxu0 0.0
        %941 = vmatmul.mubr.f32.gmra.mrb[0].mxu0 %v785
        %v942 = vpop.f32.mrb[0].mxu0
        %v943 = vadd.f32 0.0, %v942
        %v944 = vpop.f32.mrb[0].mxu0
        %v945 = vadd.f32 0.0, %v944
        %946 = vdwg.mxu0
        %v947 = vld [vmem:[%s3] sm:$0xff]
        %v948 = vld [vmem:[%s3 + $0x8] sm:$0xff]
        %v949 = vld [vmem:[%s3 + $0x10] sm:$0xff]
        %v950 = vld [vmem:[%s3 + $0x18] sm:$0xff]
        %v951 = vld [vmem:[%s3 + $0x20] sm:$0xff]
        %v952 = vld [vmem:[%s3 + $0x28] sm:$0xff]
        %v953 = vld [vmem:[%s3 + $0x30] sm:$0xff]
        %v954 = vld [vmem:[%s3 + $0x38] sm:$0xff]
        %v955 = vld [vmem:[%s3 + $0x40] sm:$0xff]
        %v956 = vld [vmem:[%s3 + $0x48] sm:$0xff]
        %v957 = vld [vmem:[%s3 + $0x50] sm:$0xff]
        %v958 = vld [vmem:[%s3 + $0x58] sm:$0xff]
        %v959 = vld [vmem:[%s3 + $0x60] sm:$0xff]
        %v960 = vld [vmem:[%s3 + $0x68] sm:$0xff]
        %v961 = vld [vmem:[%s3 + $0x70] sm:$0xff]
        %v962 = vld [vmem:[%s3 + $0x78] sm:$0xff]
        %v963 = vld [vmem:[%s3 + $0x80] sm:$0xff]
        %v964 = vld [vmem:[%s3 + $0x88] sm:$0xff]
        %v965 = vld [vmem:[%s3 + $0x90] sm:$0xff]
        %v966 = vld [vmem:[%s3 + $0x98] sm:$0xff]
        %v967 = vld [vmem:[%s3 + $0xa0] sm:$0xff]
        %v968 = vld [vmem:[%s3 + $0xa8] sm:$0xff]
        %v969 = vld [vmem:[%s3 + $0xb0] sm:$0xff]
        %v970 = vld [vmem:[%s3 + $0xb8] sm:$0xff]
        %v971 = vld [vmem:[%s3 + $0xc0] sm:$0xff]
        %v972 = vld [vmem:[%s3 + $0xc8] sm:$0xff]
        %v973 = vld [vmem:[%s3 + $0xd0] sm:$0xff]
        %v974 = vld [vmem:[%s3 + $0xd8] sm:$0xff]
        %v975 = vld [vmem:[%s3 + $0xe0] sm:$0xff]
        %v976 = vld [vmem:[%s3 + $0xe8] sm:$0xff]
        %v977 = vld [vmem:[%s3 + $0xf0] sm:$0xff]
        %v978 = vld [vmem:[%s3 + $0xf8] sm:$0xff]
        %vm979 = vcmask 523264
        %v981 = vsel %vm979, %v948, 0
        %v984 = vsel %vm979, %v950, 0
        %v987 = vsel %vm979, %v952, 0
        %v990 = vsel %vm979, %v954, 0
        %v993 = vsel %vm979, %v956, 0
        %v996 = vsel %vm979, %v958, 0
        %v999 = vsel %vm979, %v960, 0
        %v1002 = vsel %vm979, %v962, 0
        %v1005 = vsel %vm979, %v964, 0
        %v1008 = vsel %vm979, %v966, 0
        %v1011 = vsel %vm979, %v968, 0
        %v1014 = vsel %vm979, %v970, 0
        %v1017 = vsel %vm979, %v972, 0
        %v1020 = vsel %vm979, %v974, 0
        %v1023 = vsel %vm979, %v976, 0
        %v1026 = vsel %vm979, %v978, 0
        %1028 = vmatprep.subr.mxu0 %v723
        %1029 = vmatpush1.msra.mxu0 %v722
        %1030 = vmatprep.subr.mxu0 %v725
        %1031 = vmatpush1.msra.mxu0 %v724
        %1032 = vmatprep.subr.mxu0 %v727
        %1033 = vmatpush1.msra.mxu0 %v726
        %1034 = vmatprep.subr.mxu0 %v729
        %1035 = vmatpush1.msra.mxu0 %v728
        %1036 = vmatprep.subr.mxu0 %v731
        %1037 = vmatpush1.msra.mxu0 %v730
        %1038 = vmatprep.subr.mxu0 %v733
        %1039 = vmatpush1.msra.mxu0 %v732
        %1040 = vmatprep.subr.mxu0 %v735
        %1041 = vmatpush1.msra.mxu0 %v734
        %1042 = vmatprep.subr.mxu0 %v737
        %1043 = vmatpush1.msra.mxu0 %v736
        %1044 = vmatprep.subr.mxu0 %v739
        %1045 = vmatpush1.msra.mxu0 %v738
        %1046 = vmatprep.subr.mxu0 %v741
        %1047 = vmatpush1.msra.mxu0 %v740
        %1048 = vmatprep.subr.mxu0 %v743
        %1049 = vmatpush1.msra.mxu0 %v742
        %1050 = vmatprep.subr.mxu0 %v745
        %1051 = vmatpush1.msra.mxu0 %v744
        %1052 = vmatprep.subr.mxu0 %v747
        %1053 = vmatpush1.msra.mxu0 %v746
        %1054 = vmatprep.subr.mxu0 %v749
        %1055 = vmatpush1.msra.mxu0 %v748
        %1056 = vmatprep.subr.mxu0 %v751
        %1057 = vmatpush1.msra.mxu0 %v750
        %1058 = vmatprep.subr.mxu0 %v753
        %1059 = vmatpush1.msra.mxu0 %v752
        %1060 = vmatprep.subr.mxu0 %v755
        %1061 = vmatpush1.msra.mxu0 %v754
        %1062 = vmatprep.subr.mxu0 %v757
        %1063 = vmatpush1.msra.mxu0 %v756
        %1064 = vmatprep.subr.mxu0 %v759
        %1065 = vmatpush1.msra.mxu0 %v758
        %1066 = vmatprep.subr.mxu0 %v761
        %1067 = vmatpush1.msra.mxu0 %v760
        %1068 = vmatprep.subr.mxu0 %v763
        %1069 = vmatpush1.msra.mxu0 %v762
        %1070 = vmatprep.subr.mxu0 %v765
        %1071 = vmatpush1.msra.mxu0 %v764
        %1072 = vmatprep.subr.mxu0 %v767
        %1073 = vmatpush1.msra.mxu0 %v766
        %1074 = vmatprep.subr.mxu0 %v769
        %1075 = vmatpush1.msra.mxu0 %v768
        %1076 = vmatprep.subr.mxu0 0.0
        %1077 = vmatpush1.msra.mxu0 0.0
        %1078 = vmatprep.subr.mxu0 0.0
        %1079 = vmatpush1.msra.mxu0 0.0
        %1080 = vmatprep.subr.mxu0 0.0
        %1081 = vmatpush1.msra.mxu0 0.0
        %1082 = vmatprep.subr.mxu0 0.0
        %1083 = vmatpush1.msra.mxu0 0.0
        %1084 = vmatprep.subr.mxu0 0.0
        %1085 = vmatpush1.msra.mxu0 0.0
        %1086 = vmatprep.subr.mxu0 0.0
        %1087 = vmatpush1.msra.mxu0 0.0
        %1088 = vmatprep.subr.mxu0 0.0
        %1089 = vmatpush1.msra.mxu0 0.0
        %1090 = vmatprep.subr.mxu0 0.0
        %1091 = vmatpush1.msra.mxu0 0.0
        %1092 = vmatprep.mubr.f32.mxu0 %v981
        %1093 = vmatmul.mubr.f32.gmra.mrb[0].mxu0 %v947
        %v1094 = vpop.f32.mrb[0].mxu0
        %v1095 = vadd.f32 0.0, %v1094
        %v1096 = vpop.f32.mrb[0].mxu0
        %v1097 = vadd.f32 0.0, %v1096
        %1098 = vmatprep.mubr.f32.mxu0 %v984
        %1099 = vmatmul.mubr.f32.gmra.mrb[0].mxu0 %v949
        %v1100 = vpop.f32.mrb[0].mxu0
        %v1101 = vadd.f32 0.0, %v1100
        %v1102 = vpop.f32.mrb[0].mxu0
        %v1103 = vadd.f32 0.0, %v1102
        %1104 = vmatprep.mubr.f32.mxu0 %v987
        %1105 = vmatmul.mubr.f32.gmra.mrb[0].mxu0 %v951
        %v1106 = vpop.f32.mrb[0].mxu0
        %v1107 = vadd.f32 0.0, %v1106
        %v1108 = vpop.f32.mrb[0].mxu0
        %v1109 = vadd.f32 0.0, %v1108
        %1110 = vmatprep.mubr.f32.mxu0 %v990
        %1111 = vmatmul.mubr.f32.gmra.mrb[0].mxu0 %v953
        %v1112 = vpop.f32.mrb[0].mxu0
        %v1113 = vadd.f32 0.0, %v1112
        %v1114 = vpop.f32.mrb[0].mxu0
        %v1115 = vadd.f32 0.0, %v1114
        %1116 = vmatprep.mubr.f32.mxu0 %v993
        %1117 = vmatmul.mubr.f32.gmra.mrb[0].mxu0 %v955
        %v1118 = vpop.f32.mrb[0].mxu0
        %v1119 = vadd.f32 0.0, %v1118
        %v1120 = vpop.f32.mrb[0].mxu0
        %v1121 = vadd.f32 0.0, %v1120
        %1122 = vmatprep.mubr.f32.mxu0 %v996
        %1123 = vmatmul.mubr.f32.gmra.mrb[0].mxu0 %v957
        %v1124 = vpop.f32.mrb[0].mxu0
        %v1125 = vadd.f32 0.0, %v1124
        %v1126 = vpop.f32.mrb[0].mxu0
        %v1127 = vadd.f32 0.0, %v1126
        %1128 = vmatprep.mubr.f32.mxu0 %v999
        %1129 = vmatmul.mubr.f32.gmra.mrb[0].mxu0 %v959
        %v1130 = vpop.f32.mrb[0].mxu0
        %v1131 = vadd.f32 0.0, %v1130
        %v1132 = vpop.f32.mrb[0].mxu0
        %v1133 = vadd.f32 0.0, %v1132
        %1134 = vmatprep.mubr.f32.mxu0 %v1002
        %1135 = vmatmul.mubr.f32.gmra.mrb[0].mxu0 %v961
        %v1136 = vpop.f32.mrb[0].mxu0
        %v1137 = vadd.f32 0.0, %v1136
        %v1138 = vpop.f32.mrb[0].mxu0
        %v1139 = vadd.f32 0.0, %v1138
        %1140 = vmatprep.mubr.f32.mxu0 %v1005
        %1141 = vmatmul.mubr.f32.gmra.mrb[0].mxu0 %v963
        %v1142 = vpop.f32.mrb[0].mxu0
        %v1143 = vadd.f32 0.0, %v1142
        %v1144 = vpop.f32.mrb[0].mxu0
        %v1145 = vadd.f32 0.0, %v1144
        %1146 = vmatprep.mubr.f32.mxu0 %v1008
        %1147 = vmatmul.mubr.f32.gmra.mrb[0].mxu0 %v965
        %v1148 = vpop.f32.mrb[0].mxu0
        %v1149 = vadd.f32 0.0, %v1148
        %v1150 = vpop.f32.mrb[0].mxu0
        %v1151 = vadd.f32 0.0, %v1150
        %1152 = vmatprep.mubr.f32.mxu0 %v1011
        %1153 = vmatmul.mubr.f32.gmra.mrb[0].mxu0 %v967
        %v1154 = vpop.f32.mrb[0].mxu0
        %v1155 = vadd.f32 0.0, %v1154
        %v1156 = vpop.f32.mrb[0].mxu0
        %v1157 = vadd.f32 0.0, %v1156
        %1158 = vmatprep.mubr.f32.mxu0 %v1014
        %1159 = vmatmul.mubr.f32.gmra.mrb[0].mxu0 %v969
        %v1160 = vpop.f32.mrb[0].mxu0
        %v1161 = vadd.f32 0.0, %v1160
        %v1162 = vpop.f32.mrb[0].mxu0
        %v1163 = vadd.f32 0.0, %v1162
        %1164 = vmatprep.mubr.f32.mxu0 %v1017
        %1165 = vmatmul.mubr.f32.gmra.mrb[0].mxu0 %v971
        %v1166 = vpop.f32.mrb[0].mxu0
        %v1167 = vadd.f32 0.0, %v1166
        %v1168 = vpop.f32.mrb[0].mxu0
        %v1169 = vadd.f32 0.0, %v1168
        %1170 = vmatprep.mubr.f32.mxu0 %v1020
        %1171 = vmatmul.mubr.f32.gmra.mrb[0].mxu0 %v973
        %v1172 = vpop.f32.mrb[0].mxu0
        %v1173 = vadd.f32 0.0, %v1172
        %v1174 = vpop.f32.mrb[0].mxu0
        %v1175 = vadd.f32 0.0, %v1174
        %1176 = vmatprep.mubr.f32.mxu0 %v1023
        %1177 = vmatmul.mubr.f32.gmra.mrb[0].mxu0 %v975
        %v1178 = vpop.f32.mrb[0].mxu0
        %v1179 = vadd.f32 0.0, %v1178
        %v1180 = vpop.f32.mrb[0].mxu0
        %v1181 = vadd.f32 0.0, %v1180
        %1182 = vmatprep.mubr.f32.mxu0 %v1026
        %1183 = vmatmul.mubr.f32.gmra.mrb[0].mxu0 %v977
        %v1184 = vpop.f32.mrb[0].mxu0
        %v1185 = vadd.f32 0.0, %v1184
        %v1186 = vpop.f32.mrb[0].mxu0
        %v1187 = vadd.f32 0.0, %v1186
        %1188 = vdwg.mxu0
        %v1189 = vmul.f32 %v853, %v1095
        %v1190 = vmul.f32 %v855, %v1097
        %v1191 = vmul.f32 %v859, %v1101
        %v1192 = vmul.f32 %v861, %v1103
        %v1193 = vmul.f32 %v865, %v1107
        %v1194 = vmul.f32 %v867, %v1109
        %v1195 = vmul.f32 %v871, %v1113
        %v1196 = vmul.f32 %v873, %v1115
        %v1197 = vmul.f32 %v877, %v1119
        %v1198 = vmul.f32 %v879, %v1121
        %v1199 = vmul.f32 %v883, %v1125
        %v1200 = vmul.f32 %v885, %v1127
        %v1201 = vmul.f32 %v889, %v1131
        %v1202 = vmul.f32 %v891, %v1133
        %v1203 = vmul.f32 %v895, %v1137
        %v1204 = vmul.f32 %v897, %v1139
        %v1205 = vmul.f32 %v901, %v1143
        %v1206 = vmul.f32 %v903, %v1145
        %v1207 = vmul.f32 %v907, %v1149
        %v1208 = vmul.f32 %v909, %v1151
        %v1209 = vmul.f32 %v913, %v1155
        %v1210 = vmul.f32 %v915, %v1157
        %v1211 = vmul.f32 %v919, %v1161
        %v1212 = vmul.f32 %v921, %v1163
        %v1213 = vmul.f32 %v925, %v1167
        %v1214 = vmul.f32 %v927, %v1169
        %v1215 = vmul.f32 %v931, %v1173
        %v1216 = vmul.f32 %v933, %v1175
        %v1217 = vmul.f32 %v937, %v1179
        %v1218 = vmul.f32 %v939, %v1181
        %v1219 = vmul.f32 %v943, %v1185
        %v1220 = vmul.f32 %v945, %v1187
        %v1221 = vld [vmem:[%s4] sm:$0xff]
        %v1222 = vld [vmem:[%s4 + $0x8] sm:$0xff]
        %v1223 = vld [vmem:[%s4 + $0x10] sm:$0xff]
        %v1224 = vld [vmem:[%s4 + $0x18] sm:$0xff]
        %v1225 = vld [vmem:[%s4 + $0x20] sm:$0xff]
        %v1226 = vld [vmem:[%s4 + $0x28] sm:$0xff]
        %v1227 = vld [vmem:[%s4 + $0x30] sm:$0xff]
        %v1228 = vld [vmem:[%s4 + $0x38] sm:$0xff]
        %v1229 = vld [vmem:[%s5] sm:$0xff]
        %v1230 = vld [vmem:[%s5 + $0x8] sm:$0xff]
        %v1231 = vld [vmem:[%s5 + $0x10] sm:$0xff]
        %v1232 = vld [vmem:[%s5 + $0x18] sm:$0xff]
        %v1233 = vld [vmem:[%s5 + $0x20] sm:$0xff]
        %v1234 = vld [vmem:[%s5 + $0x28] sm:$0xff]
        %v1235 = vld [vmem:[%s5 + $0x30] sm:$0xff]
        %v1236 = vld [vmem:[%s5 + $0x38] sm:$0xff]
        %1237 = vmatprep.subr.mxu0 %v1097
        %1238 = vmatpush1.msra.mxu0 %v1095
        %1239 = vmatprep.subr.mxu0 %v1103
        %1240 = vmatpush1.msra.mxu0 %v1101
        %1241 = vmatprep.subr.mxu0 %v1109
        %1242 = vmatpush1.msra.mxu0 %v1107
        %1243 = vmatprep.subr.mxu0 %v1115
        %1244 = vmatpush1.msra.mxu0 %v1113
        %1245 = vmatprep.subr.mxu0 %v1121
        %1246 = vmatpush1.msra.mxu0 %v1119
        %1247 = vmatprep.subr.mxu0 %v1127
        %1248 = vmatpush1.msra.mxu0 %v1125
        %1249 = vmatprep.subr.mxu0 %v1133
        %1250 = vmatpush1.msra.mxu0 %v1131
        %1251 = vmatprep.subr.mxu0 %v1139
        %1252 = vmatpush1.msra.mxu0 %v1137
        %1253 = vmatprep.subr.mxu0 %v1145
        %1254 = vmatpush1.msra.mxu0 %v1143
        %1255 = vmatprep.subr.mxu0 %v1151
        %1256 = vmatpush1.msra.mxu0 %v1149
        %1257 = vmatprep.subr.mxu0 %v1157
        %1258 = vmatpush1.msra.mxu0 %v1155
        %1259 = vmatprep.subr.mxu0 %v1163
        %1260 = vmatpush1.msra.mxu0 %v1161
        %1261 = vmatprep.subr.mxu0 %v1169
        %1262 = vmatpush1.msra.mxu0 %v1167
        %1263 = vmatprep.subr.mxu0 %v1175
        %1264 = vmatpush1.msra.mxu0 %v1173
        %1265 = vmatprep.subr.mxu0 %v1181
        %1266 = vmatpush1.msra.mxu0 %v1179
        %1267 = vmatprep.subr.mxu0 %v1187
        %1268 = vmatpush1.msra.mxu0 %v1185
        %1269 = vmatprep.subr.mxu0 0.0
        %1270 = vmatpush1.msra.mxu0 0.0
        %1271 = vmatprep.subr.mxu0 0.0
        %1272 = vmatpush1.msra.mxu0 0.0
        %1273 = vmatprep.subr.mxu0 0.0
        %1274 = vmatpush1.msra.mxu0 0.0
        %1275 = vmatprep.subr.mxu0 0.0
        %1276 = vmatpush1.msra.mxu0 0.0
        %1277 = vmatprep.subr.mxu0 0.0
        %1278 = vmatpush1.msra.mxu0 0.0
        %1279 = vmatprep.subr.mxu0 0.0
        %1280 = vmatpush1.msra.mxu0 0.0
        %1281 = vmatprep.subr.mxu0 0.0
        %1282 = vmatpush1.msra.mxu0 0.0
        %1283 = vmatprep.subr.mxu0 0.0
        %1284 = vmatpush1.msra.mxu0 0.0
        %1285 = vmatprep.subr.mxu0 0.0
        %1286 = vmatpush1.msra.mxu0 0.0
        %1287 = vmatprep.subr.mxu0 0.0
        %1288 = vmatpush1.msra.mxu0 0.0
        %1289 = vmatprep.subr.mxu0 0.0
        %1290 = vmatpush1.msra.mxu0 0.0
        %1291 = vmatprep.subr.mxu0 0.0
        %1292 = vmatpush1.msra.mxu0 0.0
        %1293 = vmatprep.subr.mxu0 0.0
        %1294 = vmatpush1.msra.mxu0 0.0
        %1295 = vmatprep.subr.mxu0 0.0
        %1296 = vmatpush1.msra.mxu0 0.0
        %1297 = vmatprep.subr.mxu0 0.0
        %1298 = vmatpush1.msra.mxu0 0.0
        %1299 = vmatprep.subr.mxu0 0.0
        %1300 = vmatpush1.msra.mxu0 0.0
        %1301 = vmatprep.mubr.f32.mxu0 0.0
        %1302 = vmatmul.mubr.f32.gmra.mrb[0].mxu0 %v1229
        %v1303 = vpop.f32.mrb[0].mxu0
        %v1304 = vadd.f32 0.0, %v1303
        %v1305 = vpop.f32.mrb[0].mxu0
        %v1306 = vadd.f32 0.0, %v1305
        %1307 = vmatprep.mubr.f32.mxu0 0.0
        %1308 = vmatmul.mubr.f32.gmra.mrb[0].mxu0 %v1230
        %v1309 = vpop.f32.mrb[0].mxu0
        %v1310 = vadd.f32 0.0, %v1309
        %v1311 = vpop.f32.mrb[0].mxu0
        %v1312 = vadd.f32 0.0, %v1311
        %1313 = vmatprep.mubr.f32.mxu0 0.0
        %1314 = vmatmul.mubr.f32.gmra.mrb[0].mxu0 %v1231
        %v1315 = vpop.f32.mrb[0].mxu0
        %v1316 = vadd.f32 0.0, %v1315
        %v1317 = vpop.f32.mrb[0].mxu0
        %v1318 = vadd.f32 0.0, %v1317
        %1319 = vmatprep.mubr.f32.mxu0 0.0
        %1320 = vmatmul.mubr.f32.gmra.mrb[0].mxu0 %v1232
        %v1321 = vpop.f32.mrb[0].mxu0
        %v1322 = vadd.f32 0.0, %v1321
        %v1323 = vpop.f32.mrb[0].mxu0
        %v1324 = vadd.f32 0.0, %v1323
        %1325 = vmatprep.mubr.f32.mxu0 0.0
        %1326 = vmatmul.mubr.f32.gmra.mrb[0].mxu0 %v1233
        %v1327 = vpop.f32.mrb[0].mxu0
        %v1328 = vadd.f32 0.0, %v1327
        %v1329 = vpop.f32.mrb[0].mxu0
        %v1330 = vadd.f32 0.0, %v1329
        %1331 = vmatprep.mubr.f32.mxu0 0.0
        %1332 = vmatmul.mubr.f32.gmra.mrb[0].mxu0 %v1234
        %v1333 = vpop.f32.mrb[0].mxu0
        %v1334 = vadd.f32 0.0, %v1333
        %v1335 = vpop.f32.mrb[0].mxu0
        %v1336 = vadd.f32 0.0, %v1335
        %1337 = vmatprep.mubr.f32.mxu0 0.0
        %1338 = vmatmul.mubr.f32.gmra.mrb[0].mxu0 %v1235
        %v1339 = vpop.f32.mrb[0].mxu0
        %v1340 = vadd.f32 0.0, %v1339
        %v1341 = vpop.f32.mrb[0].mxu0
        %v1342 = vadd.f32 0.0, %v1341
        %1343 = vmatprep.mubr.f32.mxu0 0.0
        %1344 = vmatmul.mubr.f32.gmra.mrb[0].mxu0 %v1236
        %v1345 = vpop.f32.mrb[0].mxu0
        %v1346 = vadd.f32 0.0, %v1345
        %v1347 = vpop.f32.mrb[0].mxu0
        %v1348 = vadd.f32 0.0, %v1347
        %1349 = vdwg.mxu0
        %1350 = vmatprep.subr.mxu0 %v855
        %1351 = vmatpush1.msra.mxu0 %v853
        %1352 = vmatprep.subr.mxu0 %v861
        %1353 = vmatpush1.msra.mxu0 %v859
        %1354 = vmatprep.subr.mxu0 %v867
        %1355 = vmatpush1.msra.mxu0 %v865
        %1356 = vmatprep.subr.mxu0 %v873
        %1357 = vmatpush1.msra.mxu0 %v871
        %1358 = vmatprep.subr.mxu0 %v879
        %1359 = vmatpush1.msra.mxu0 %v877
        %1360 = vmatprep.subr.mxu0 %v885
        %1361 = vmatpush1.msra.mxu0 %v883
        %1362 = vmatprep.subr.mxu0 %v891
        %1363 = vmatpush1.msra.mxu0 %v889
        %1364 = vmatprep.subr.mxu0 %v897
        %1365 = vmatpush1.msra.mxu0 %v895
        %1366 = vmatprep.subr.mxu0 %v903
        %1367 = vmatpush1.msra.mxu0 %v901
        %1368 = vmatprep.subr.mxu0 %v909
        %1369 = vmatpush1.msra.mxu0 %v907
        %1370 = vmatprep.subr.mxu0 %v915
        %1371 = vmatpush1.msra.mxu0 %v913
        %1372 = vmatprep.subr.mxu0 %v921
        %1373 = vmatpush1.msra.mxu0 %v919
        %1374 = vmatprep.subr.mxu0 %v927
        %1375 = vmatpush1.msra.mxu0 %v925
        %1376 = vmatprep.subr.mxu0 %v933
        %1377 = vmatpush1.msra.mxu0 %v931
        %1378 = vmatprep.subr.mxu0 %v939
        %1379 = vmatpush1.msra.mxu0 %v937
        %1380 = vmatprep.subr.mxu0 %v945
        %1381 = vmatpush1.msra.mxu0 %v943
        %1382 = vmatprep.subr.mxu0 0.0
        %1383 = vmatpush1.msra.mxu0 0.0
        %1384 = vmatprep.subr.mxu0 0.0
        %1385 = vmatpush1.msra.mxu0 0.0
        %1386 = vmatprep.subr.mxu0 0.0
        %1387 = vmatpush1.msra.mxu0 0.0
        %1388 = vmatprep.subr.mxu0 0.0
        %1389 = vmatpush1.msra.mxu0 0.0
        %1390 = vmatprep.subr.mxu0 0.0
        %1391 = vmatpush1.msra.mxu0 0.0
        %1392 = vmatprep.subr.mxu0 0.0
        %1393 = vmatpush1.msra.mxu0 0.0
        %1394 = vmatprep.subr.mxu0 0.0
        %1395 = vmatpush1.msra.mxu0 0.0
        %1396 = vmatprep.subr.mxu0 0.0
        %1397 = vmatpush1.msra.mxu0 0.0
        %1398 = vmatprep.subr.mxu0 0.0
        %1399 = vmatpush1.msra.mxu0 0.0
        %1400 = vmatprep.subr.mxu0 0.0
        %1401 = vmatpush1.msra.mxu0 0.0
        %1402 = vmatprep.subr.mxu0 0.0
        %1403 = vmatpush1.msra.mxu0 0.0
        %1404 = vmatprep.subr.mxu0 0.0
        %1405 = vmatpush1.msra.mxu0 0.0
        %1406 = vmatprep.subr.mxu0 0.0
        %1407 = vmatpush1.msra.mxu0 0.0
        %1408 = vmatprep.subr.mxu0 0.0
        %1409 = vmatpush1.msra.mxu0 0.0
        %1410 = vmatprep.subr.mxu0 0.0
        %1411 = vmatpush1.msra.mxu0 0.0
        %1412 = vmatprep.subr.mxu0 0.0
        %1413 = vmatpush1.msra.mxu0 0.0
        %1414 = vmatprep.mubr.f32.mxu0 0.0
        %1415 = vmatmul.mubr.f32.gmra.mrb[0].mxu0 %v1221
        %v1416 = vpop.f32.mrb[0].mxu0
        %v1417 = vadd.f32 %v1304, %v1416
        %v1418 = vpop.f32.mrb[0].mxu0
        %v1419 = vadd.f32 %v1306, %v1418
        %1420 = vmatprep.mubr.f32.mxu0 0.0
        %1421 = vmatmul.mubr.f32.gmra.mrb[0].mxu0 %v1222
        %v1422 = vpop.f32.mrb[0].mxu0
        %v1423 = vadd.f32 %v1310, %v1422
        %v1424 = vpop.f32.mrb[0].mxu0
        %v1425 = vadd.f32 %v1312, %v1424
        %1426 = vmatprep.mubr.f32.mxu0 0.0
        %1427 = vmatmul.mubr.f32.gmra.mrb[0].mxu0 %v1223
        %v1428 = vpop.f32.mrb[0].mxu0
        %v1429 = vadd.f32 %v1316, %v1428
        %v1430 = vpop.f32.mrb[0].mxu0
        %v1431 = vadd.f32 %v1318, %v1430
        %1432 = vmatprep.mubr.f32.mxu0 0.0
        %1433 = vmatmul.mubr.f32.gmra.mrb[0].mxu0 %v1224
        %v1434 = vpop.f32.mrb[0].mxu0
        %v1435 = vadd.f32 %v1322, %v1434
        %v1436 = vpop.f32.mrb[0].mxu0
        %v1437 = vadd.f32 %v1324, %v1436
        %1438 = vmatprep.mubr.f32.mxu0 0.0
        %1439 = vmatmul.mubr.f32.gmra.mrb[0].mxu0 %v1225
        %v1440 = vpop.f32.mrb[0].mxu0
        %v1441 = vadd.f32 %v1328, %v1440
        %v1442 = vpop.f32.mrb[0].mxu0
        %v1443 = vadd.f32 %v1330, %v1442
        %1444 = vmatprep.mubr.f32.mxu0 0.0
        %1445 = vmatmul.mubr.f32.gmra.mrb[0].mxu0 %v1226
        %v1446 = vpop.f32.mrb[0].mxu0
        %v1447 = vadd.f32 %v1334, %v1446
        %v1448 = vpop.f32.mrb[0].mxu0
        %v1449 = vadd.f32 %v1336, %v1448
        %1450 = vmatprep.mubr.f32.mxu0 0.0
        %1451 = vmatmul.mubr.f32.gmra.mrb[0].mxu0 %v1227
        %v1452 = vpop.f32.mrb[0].mxu0
        %v1453 = vadd.f32 %v1340, %v1452
        %v1454 = vpop.f32.mrb[0].mxu0
        %v1455 = vadd.f32 %v1342, %v1454
        %1456 = vmatprep.mubr.f32.mxu0 0.0
        %1457 = vmatmul.mubr.f32.gmra.mrb[0].mxu0 %v1228
        %v1458 = vpop.f32.mrb[0].mxu0
        %v1459 = vadd.f32 %v1346, %v1458
        %v1460 = vpop.f32.mrb[0].mxu0
        %v1461 = vadd.f32 %v1348, %v1460
        %1462 = vdwg.mxu0
        %v1463 = vld [vmem:[%s6] sm:$0xff]
        %v1464 = vld [vmem:[%s6 + $0x8] sm:$0xff]
        %v1465 = vld [vmem:[%s6 + $0x10] sm:$0xff]
        %v1466 = vld [vmem:[%s6 + $0x18] sm:$0xff]
        %v1467 = vld [vmem:[%s6 + $0x20] sm:$0xff]
        %v1468 = vld [vmem:[%s6 + $0x28] sm:$0xff]
        %v1469 = vld [vmem:[%s6 + $0x30] sm:$0xff]
        %v1470 = vld [vmem:[%s6 + $0x38] sm:$0xff]
        %1472 = vset.pattern.permute.xlu0 0
        %1473 = vperm.xlu0 %1472, %v1463
        %v1474 = vpop.permute.xlu0 %1473
        %1477 = vset.pattern.permute.xlu0 0
        %1478 = vperm.xlu0 %1477, %v1464
        %v1479 = vpop.permute.xlu0 %1478
        %1482 = vset.pattern.permute.xlu0 0
        %1483 = vperm.xlu0 %1482, %v1465
        %v1484 = vpop.permute.xlu0 %1483
        %1487 = vset.pattern.permute.xlu0 0
        %1488 = vperm.xlu0 %1487, %v1466
        %v1489 = vpop.permute.xlu0 %1488
        %1492 = vset.pattern.permute.xlu0 0
        %1493 = vperm.xlu0 %1492, %v1467
        %v1494 = vpop.permute.xlu0 %1493
        %1497 = vset.pattern.permute.xlu0 0
        %1498 = vperm.xlu0 %1497, %v1468
        %v1499 = vpop.permute.xlu0 %1498
        %1502 = vset.pattern.permute.xlu0 0
        %1503 = vperm.xlu0 %1502, %v1469
        %v1504 = vpop.permute.xlu0 %1503
        %1507 = vset.pattern.permute.xlu0 0
        %1508 = vperm.xlu0 %1507, %v1470
        %v1509 = vpop.permute.xlu0 %1508
        %v1511 = vadd.f32 %v1417, %v1474
        %v1512 = vadd.f32 %v1419, %v1474
        %v1513 = vadd.f32 %v1423, %v1479
        %v1514 = vadd.f32 %v1425, %v1479
        %v1515 = vadd.f32 %v1429, %v1484
        %v1516 = vadd.f32 %v1431, %v1484
        %v1517 = vadd.f32 %v1435, %v1489
        %v1518 = vadd.f32 %v1437, %v1489
        %v1519 = vadd.f32 %v1441, %v1494
        %v1520 = vadd.f32 %v1443, %v1494
        %v1521 = vadd.f32 %v1447, %v1499
        %v1522 = vadd.f32 %v1449, %v1499
        %v1523 = vadd.f32 %v1453, %v1504
        %v1524 = vadd.f32 %v1455, %v1504
        %v1525 = vadd.f32 %v1459, %v1509
        %v1526 = vadd.f32 %v1461, %v1509
        %v1527 = vmax.f32 %v1511, 0.0
        %v1528 = vmax.f32 %v1512, 0.0
        %v1529 = vmax.f32 %v1513, 0.0
        %v1530 = vmax.f32 %v1514, 0.0
        %v1531 = vmax.f32 %v1515, 0.0
        %v1532 = vmax.f32 %v1516, 0.0
        %v1533 = vmax.f32 %v1517, 0.0
        %v1534 = vmax.f32 %v1518, 0.0
        %v1535 = vmax.f32 %v1519, 0.0
        %v1536 = vmax.f32 %v1520, 0.0
        %v1537 = vmax.f32 %v1521, 0.0
        %v1538 = vmax.f32 %v1522, 0.0
        %v1539 = vmax.f32 %v1523, 0.0
        %v1540 = vmax.f32 %v1524, 0.0
        %v1541 = vmax.f32 %v1525, 0.0
        %v1542 = vmax.f32 %v1526, 0.0
        %v1543 = vld [vmem:[%s7] sm:$0xff]
        %v1544 = vld [vmem:[%s7 + $0x8] sm:$0xff]
        %v1545 = vld [vmem:[%s7 + $0x10] sm:$0xff]
        %v1546 = vld [vmem:[%s7 + $0x18] sm:$0xff]
        %v1547 = vld [vmem:[%s8] sm:$0xff]
        %v1548 = vld [vmem:[%s8 + $0x8] sm:$0xff]
        %v1549 = vld [vmem:[%s8 + $0x10] sm:$0xff]
        %v1550 = vld [vmem:[%s8 + $0x18] sm:$0xff]
        %1552 = vset.pattern.permute.xlu0 0
        %1553 = vperm.xlu0 %1552, %v1547
        %v1554 = vpop.permute.xlu0 %1553
        %1557 = vset.pattern.permute.xlu0 0
        %1558 = vperm.xlu0 %1557, %v1548
        %v1559 = vpop.permute.xlu0 %1558
        %1562 = vset.pattern.permute.xlu0 0
        %1563 = vperm.xlu0 %1562, %v1549
        %v1564 = vpop.permute.xlu0 %1563
        %1567 = vset.pattern.permute.xlu0 0
        %1568 = vperm.xlu0 %1567, %v1550
        %v1569 = vpop.permute.xlu0 %1568
        %v1572 = vsel %vm979, %v1543, 0
        %v1575 = vsel %vm979, %v1544, 0
        %v1578 = vsel %vm979, %v1545, 0
        %v1581 = vsel %vm979, %v1546, 0
        %1583 = vmatprep.subr.mxu0 %v1528
        %1584 = vmatpush1.msra.mxu0 %v1527
        %1585 = vmatprep.subr.mxu0 %v1530
        %1586 = vmatpush1.msra.mxu0 %v1529
        %1587 = vmatprep.subr.mxu0 %v1532
        %1588 = vmatpush1.msra.mxu0 %v1531
        %1589 = vmatprep.subr.mxu0 %v1534
        %1590 = vmatpush1.msra.mxu0 %v1533
        %1591 = vmatprep.subr.mxu0 %v1536
        %1592 = vmatpush1.msra.mxu0 %v1535
        %1593 = vmatprep.subr.mxu0 %v1538
        %1594 = vmatpush1.msra.mxu0 %v1537
        %1595 = vmatprep.subr.mxu0 %v1540
        %1596 = vmatpush1.msra.mxu0 %v1539
        %1597 = vmatprep.subr.mxu0 %v1542
        %1598 = vmatpush1.msra.mxu0 %v1541
        %1599 = vmatprep.subr.mxu0 0.0
        %1600 = vmatpush1.msra.mxu0 0.0
        %1601 = vmatprep.subr.mxu0 0.0
        %1602 = vmatpush1.msra.mxu0 0.0
        %1603 = vmatprep.subr.mxu0 0.0
        %1604 = vmatpush1.msra.mxu0 0.0
        %1605 = vmatprep.subr.mxu0 0.0
        %1606 = vmatpush1.msra.mxu0 0.0
        %1607 = vmatprep.subr.mxu0 0.0
        %1608 = vmatpush1.msra.mxu0 0.0
        %1609 = vmatprep.subr.mxu0 0.0
        %1610 = vmatpush1.msra.mxu0 0.0
        %1611 = vmatprep.subr.mxu0 0.0
        %1612 = vmatpush1.msra.mxu0 0.0
        %1613 = vmatprep.subr.mxu0 0.0
        %1614 = vmatpush1.msra.mxu0 0.0
        %1615 = vmatprep.subr.mxu0 0.0
        %1616 = vmatpush1.msra.mxu0 0.0
        %1617 = vmatprep.subr.mxu0 0.0
        %1618 = vmatpush1.msra.mxu0 0.0
        %1619 = vmatprep.subr.mxu0 0.0
        %1620 = vmatpush1.msra.mxu0 0.0
        %1621 = vmatprep.subr.mxu0 0.0
        %1622 = vmatpush1.msra.mxu0 0.0
        %1623 = vmatprep.subr.mxu0 0.0
        %1624 = vmatpush1.msra.mxu0 0.0
        %1625 = vmatprep.subr.mxu0 0.0
        %1626 = vmatpush1.msra.mxu0 0.0
        %1627 = vmatprep.subr.mxu0 0.0
        %1628 = vmatpush1.msra.mxu0 0.0
        %1629 = vmatprep.subr.mxu0 0.0
        %1630 = vmatpush1.msra.mxu0 0.0
        %1631 = vmatprep.subr.mxu0 0.0
        %1632 = vmatpush1.msra.mxu0 0.0
        %1633 = vmatprep.subr.mxu0 0.0
        %1634 = vmatpush1.msra.mxu0 0.0
        %1635 = vmatprep.subr.mxu0 0.0
        %1636 = vmatpush1.msra.mxu0 0.0
        %1637 = vmatprep.subr.mxu0 0.0
        %1638 = vmatpush1.msra.mxu0 0.0
        %1639 = vmatprep.subr.mxu0 0.0
        %1640 = vmatpush1.msra.mxu0 0.0
        %1641 = vmatprep.subr.mxu0 0.0
        %1642 = vmatpush1.msra.mxu0 0.0
        %1643 = vmatprep.subr.mxu0 0.0
        %1644 = vmatpush1.msra.mxu0 0.0
        %1645 = vmatprep.subr.mxu0 0.0
        %1646 = vmatpush1.msra.mxu0 0.0
        %1647 = vmatprep.mubr.f32.mxu0 0.0
        %1648 = vmatmul.mubr.f32.gmra.mrb[0].mxu0 %v1572
        %v1649 = vpop.f32.mrb[0].mxu0
        %v1650 = vadd.f32 %v1554, %v1649
        %v1651 = vpop.f32.mrb[0].mxu0
        %v1652 = vadd.f32 %v1554, %v1651
        %1653 = vmatprep.mubr.f32.mxu0 0.0
        %1654 = vmatmul.mubr.f32.gmra.mrb[0].mxu0 %v1575
        %v1655 = vpop.f32.mrb[0].mxu0
        %v1656 = vadd.f32 %v1559, %v1655
        %v1657 = vpop.f32.mrb[0].mxu0
        %v1658 = vadd.f32 %v1559, %v1657
        %1659 = vmatprep.mubr.f32.mxu0 0.0
        %1660 = vmatmul.mubr.f32.gmra.mrb[0].mxu0 %v1578
        %v1661 = vpop.f32.mrb[0].mxu0
        %v1662 = vadd.f32 %v1564, %v1661
        %v1663 = vpop.f32.mrb[0].mxu0
        %v1664 = vadd.f32 %v1564, %v1663
        %1665 = vmatprep.mubr.f32.mxu0 0.0
        %1666 = vmatmul.mubr.f32.gmra.mrb[0].mxu0 %v1581
        %v1667 = vpop.f32.mrb[0].mxu0
        %v1668 = vadd.f32 %v1569, %v1667
        %v1669 = vpop.f32.mrb[0].mxu0
        %v1670 = vadd.f32 %v1569, %v1669
        %1671 = vdwg.mxu0
        %v1672 = vmax.f32 %v1650, 0.0
        %v1673 = vmax.f32 %v1652, 0.0
        %v1674 = vmax.f32 %v1656, 0.0
        %v1675 = vmax.f32 %v1658, 0.0
        %v1676 = vmax.f32 %v1662, 0.0
        %v1677 = vmax.f32 %v1664, 0.0
        %v1678 = vmax.f32 %v1668, 0.0
        %v1679 = vmax.f32 %v1670, 0.0
        %v1680 = vld [vmem:[%s9] sm:$0xff]
        %v1681 = vld [vmem:[%s9 + $0x8] sm:$0xff]
        %v1682 = vld [vmem:[%s10] sm:$0xff]
        %v1683 = vld [vmem:[%s10 + $0x8] sm:$0xff]
        %1685 = vset.pattern.permute.xlu0 0
        %1686 = vperm.xlu0 %1685, %v1682
        %v1687 = vpop.permute.xlu0 %1686
        %1690 = vset.pattern.permute.xlu0 0
        %1691 = vperm.xlu0 %1690, %v1683
        %v1692 = vpop.permute.xlu0 %1691
        %vm1694 = vcmask 261120
        %v1696 = vsel %vm1694, %v1680, 0
        %v1699 = vsel %vm1694, %v1681, 0
        %1701 = vmatprep.subr.mxu0 %v1673
        %1702 = vmatpush1.msra.mxu0 %v1672
        %1703 = vmatprep.subr.mxu0 %v1675
        %1704 = vmatpush1.msra.mxu0 %v1674
        %1705 = vmatprep.subr.mxu0 %v1677
        %1706 = vmatpush1.msra.mxu0 %v1676
        %1707 = vmatprep.subr.mxu0 %v1679
        %1708 = vmatpush1.msra.mxu0 %v1678
        %1709 = vmatprep.subr.mxu0 0.0
        %1710 = vmatpush1.msra.mxu0 0.0
        %1711 = vmatprep.subr.mxu0 0.0
        %1712 = vmatpush1.msra.mxu0 0.0
        %1713 = vmatprep.subr.mxu0 0.0
        %1714 = vmatpush1.msra.mxu0 0.0
        %1715 = vmatprep.subr.mxu0 0.0
        %1716 = vmatpush1.msra.mxu0 0.0
        %1717 = vmatprep.subr.mxu0 0.0
        %1718 = vmatpush1.msra.mxu0 0.0
        %1719 = vmatprep.subr.mxu0 0.0
        %1720 = vmatpush1.msra.mxu0 0.0
        %1721 = vmatprep.subr.mxu0 0.0
        %1722 = vmatpush1.msra.mxu0 0.0
        %1723 = vmatprep.subr.mxu0 0.0
        %1724 = vmatpush1.msra.mxu0 0.0
        %1725 = vmatprep.subr.mxu0 0.0
        %1726 = vmatpush1.msra.mxu0 0.0
        %1727 = vmatprep.subr.mxu0 0.0
        %1728 = vmatpush1.msra.mxu0 0.0
        %1729 = vmatprep.subr.mxu0 0.0
        %1730 = vmatpush1.msra.mxu0 0.0
        %1731 = vmatprep.subr.mxu0 0.0
        %1732 = vmatpush1.msra.mxu0 0.0
        %1733 = vmatprep.subr.mxu0 0.0
        %1734 = vmatpush1.msra.mxu0 0.0
        %1735 = vmatprep.subr.mxu0 0.0
        %1736 = vmatpush1.msra.mxu0 0.0
        %1737 = vmatprep.subr.mxu0 0.0
        %1738 = vmatpush1.msra.mxu0 0.0
        %1739 = vmatprep.subr.mxu0 0.0
        %1740 = vmatpush1.msra.mxu0 0.0
        %1741 = vmatprep.subr.mxu0 0.0
        %1742 = vmatpush1.msra.mxu0 0.0
        %1743 = vmatprep.subr.mxu0 0.0
        %1744 = vmatpush1.msra.mxu0 0.0
        %1745 = vmatprep.subr.mxu0 0.0
        %1746 = vmatpush1.msra.mxu0 0.0
        %1747 = vmatprep.subr.mxu0 0.0
        %1748 = vmatpush1.msra.mxu0 0.0
        %1749 = vmatprep.subr.mxu0 0.0
        %1750 = vmatpush1.msra.mxu0 0.0
        %1751 = vmatprep.subr.mxu0 0.0
        %1752 = vmatpush1.msra.mxu0 0.0
        %1753 = vmatprep.subr.mxu0 0.0
        %1754 = vmatpush1.msra.mxu0 0.0
        %1755 = vmatprep.subr.mxu0 0.0
        %1756 = vmatpush1.msra.mxu0 0.0
        %1757 = vmatprep.subr.mxu0 0.0
        %1758 = vmatpush1.msra.mxu0 0.0
        %1759 = vmatprep.subr.mxu0 0.0
        %1760 = vmatpush1.msra.mxu0 0.0
        %1761 = vmatprep.subr.mxu0 0.0
        %1762 = vmatpush1.msra.mxu0 0.0
        %1763 = vmatprep.subr.mxu0 0.0
        %1764 = vmatpush1.msra.mxu0 0.0
        %1765 = vmatprep.mubr.f32.mxu0 0.0
        %1766 = vmatmul.mubr.f32.gmra.mrb[0].mxu0 %v1696
        %v1767 = vpop.f32.mrb[0].mxu0
        %v1768 = vadd.f32 %v1687, %v1767
        %v1769 = vpop.f32.mrb[0].mxu0
        %v1770 = vadd.f32 %v1687, %v1769
        %1771 = vmatprep.mubr.f32.mxu0 0.0
        %1772 = vmatmul.mubr.f32.gmra.mrb[0].mxu0 %v1699
        %v1773 = vpop.f32.mrb[0].mxu0
        %v1774 = vadd.f32 %v1692, %v1773
        %v1775 = vpop.f32.mrb[0].mxu0
        %v1776 = vadd.f32 %v1692, %v1775
        %1777 = vdwg.mxu0
        %v1778 = vmax.f32 %v1768, 0.0
        %v1779 = vmax.f32 %v1770, 0.0
        %v1780 = vmax.f32 %v1774, 0.0
        %v1781 = vmax.f32 %v1776, 0.0
        %v1782 = vld [vmem:[%s11] sm:$0x1]
        %v1783 = vld [vmem:[%s12] sm:$0x1]
        %vm1784 = vcmask 130048
        %v1786 = vsel %vm1784, %v1783, 0
        %1788 = vmatprep.subr.mxu0 %v1779
        %1789 = vmatpush1.msra.mxu0 %v1778
        %1790 = vmatprep.subr.mxu0 %v1781
        %1791 = vmatpush1.msra.mxu0 %v1780
        %1792 = vmatprep.subr.mxu0 0.0
        %1793 = vmatpush1.msra.mxu0 0.0
        %1794 = vmatprep.subr.mxu0 0.0
        %1795 = vmatpush1.msra.mxu0 0.0
        %1796 = vmatprep.subr.mxu0 0.0
        %1797 = vmatpush1.msra.mxu0 0.0
        %1798 = vmatprep.subr.mxu0 0.0
        %1799 = vmatpush1.msra.mxu0 0.0
        %1800 = vmatprep.subr.mxu0 0.0
        %1801 = vmatpush1.msra.mxu0 0.0
        %1802 = vmatprep.subr.mxu0 0.0
        %1803 = vmatpush1.msra.mxu0 0.0
        %1804 = vmatprep.subr.mxu0 0.0
        %1805 = vmatpush1.msra.mxu0 0.0
        %1806 = vmatprep.subr.mxu0 0.0
        %1807 = vmatpush1.msra.mxu0 0.0
        %1808 = vmatprep.subr.mxu0 0.0
        %1809 = vmatpush1.msra.mxu0 0.0
        %1810 = vmatprep.subr.mxu0 0.0
        %1811 = vmatpush1.msra.mxu0 0.0
        %1812 = vmatprep.subr.mxu0 0.0
        %1813 = vmatpush1.msra.mxu0 0.0
        %1814 = vmatprep.subr.mxu0 0.0
        %1815 = vmatpush1.msra.mxu0 0.0
        %1816 = vmatprep.subr.mxu0 0.0
        %1817 = vmatpush1.msra.mxu0 0.0
        %1818 = vmatprep.subr.mxu0 0.0
        %1819 = vmatpush1.msra.mxu0 0.0
        %1820 = vmatprep.subr.mxu0 0.0
        %1821 = vmatpush1.msra.mxu0 0.0
        %1822 = vmatprep.subr.mxu0 0.0
        %1823 = vmatpush1.msra.mxu0 0.0
        %1824 = vmatprep.subr.mxu0 0.0
        %1825 = vmatpush1.msra.mxu0 0.0
        %1826 = vmatprep.subr.mxu0 0.0
        %1827 = vmatpush1.msra.mxu0 0.0
        %1828 = vmatprep.subr.mxu0 0.0
        %1829 = vmatpush1.msra.mxu0 0.0
        %1830 = vmatprep.subr.mxu0 0.0
        %1831 = vmatpush1.msra.mxu0 0.0
        %1832 = vmatprep.subr.mxu0 0.0
        %1833 = vmatpush1.msra.mxu0 0.0
        %1834 = vmatprep.subr.mxu0 0.0
        %1835 = vmatpush1.msra.mxu0 0.0
        %1836 = vmatprep.subr.mxu0 0.0
        %1837 = vmatpush1.msra.mxu0 0.0
        %1838 = vmatprep.subr.mxu0 0.0
        %1839 = vmatpush1.msra.mxu0 0.0
        %1840 = vmatprep.subr.mxu0 0.0
        %1841 = vmatpush1.msra.mxu0 0.0
        %1842 = vmatprep.subr.mxu0 0.0
        %1843 = vmatpush1.msra.mxu0 0.0
        %1844 = vmatprep.subr.mxu0 0.0
        %1845 = vmatpush1.msra.mxu0 0.0
        %1846 = vmatprep.subr.mxu0 0.0
        %1847 = vmatpush1.msra.mxu0 0.0
        %1848 = vmatprep.subr.mxu0 0.0
        %1849 = vmatpush1.msra.mxu0 0.0
        %1850 = vmatprep.subr.mxu0 0.0
        %1851 = vmatpush1.msra.mxu0 0.0
        %1852 = vmatprep.mubr.f32.mxu0 0.0
        %1853 = vmatmul.mubr.f32.gmra.mrb[0].mxu0 %v1786
        %v1854 = vpop.f32.mrb[0].mxu0
        %v1855 = vadd.f32 0.0, %v1854
        %v1856 = vpop.f32.mrb[0].mxu0
        %v1857 = vadd.f32 0.0, %v1856
        %1858 = vdwg.mxu0
        %1859 = vmatprep.subr.mxu0 %v1190
        %1860 = vmatpush1.msra.mxu0 %v1189
        %1861 = vmatprep.subr.mxu0 %v1192
        %1862 = vmatpush1.msra.mxu0 %v1191
        %1863 = vmatprep.subr.mxu0 %v1194
        %1864 = vmatpush1.msra.mxu0 %v1193
        %1865 = vmatprep.subr.mxu0 %v1196
        %1866 = vmatpush1.msra.mxu0 %v1195
        %1867 = vmatprep.subr.mxu0 %v1198
        %1868 = vmatpush1.msra.mxu0 %v1197
        %1869 = vmatprep.subr.mxu0 %v1200
        %1870 = vmatpush1.msra.mxu0 %v1199
        %1871 = vmatprep.subr.mxu0 %v1202
        %1872 = vmatpush1.msra.mxu0 %v1201
        %1873 = vmatprep.subr.mxu0 %v1204
        %1874 = vmatpush1.msra.mxu0 %v1203
        %1875 = vmatprep.subr.mxu0 %v1206
        %1876 = vmatpush1.msra.mxu0 %v1205
        %1877 = vmatprep.subr.mxu0 %v1208
        %1878 = vmatpush1.msra.mxu0 %v1207
        %1879 = vmatprep.subr.mxu0 %v1210
        %1880 = vmatpush1.msra.mxu0 %v1209
        %1881 = vmatprep.subr.mxu0 %v1212
        %1882 = vmatpush1.msra.mxu0 %v1211
        %1883 = vmatprep.subr.mxu0 %v1214
        %1884 = vmatpush1.msra.mxu0 %v1213
        %1885 = vmatprep.subr.mxu0 %v1216
        %1886 = vmatpush1.msra.mxu0 %v1215
        %1887 = vmatprep.subr.mxu0 %v1218
        %1888 = vmatpush1.msra.mxu0 %v1217
        %1889 = vmatprep.subr.mxu0 %v1220
        %1890 = vmatpush1.msra.mxu0 %v1219
        %1891 = vmatprep.subr.mxu0 0.0
        %1892 = vmatpush1.msra.mxu0 0.0
        %1893 = vmatprep.subr.mxu0 0.0
        %1894 = vmatpush1.msra.mxu0 0.0
        %1895 = vmatprep.subr.mxu0 0.0
        %1896 = vmatpush1.msra.mxu0 0.0
        %1897 = vmatprep.subr.mxu0 0.0
        %1898 = vmatpush1.msra.mxu0 0.0
        %1899 = vmatprep.subr.mxu0 0.0
        %1900 = vmatpush1.msra.mxu0 0.0
        %1901 = vmatprep.subr.mxu0 0.0
        %1902 = vmatpush1.msra.mxu0 0.0
        %1903 = vmatprep.subr.mxu0 0.0
        %1904 = vmatpush1.msra.mxu0 0.0
        %1905 = vmatprep.subr.mxu0 0.0
        %1906 = vmatpush1.msra.mxu0 0.0
        %1907 = vmatprep.subr.mxu0 0.0
        %1908 = vmatpush1.msra.mxu0 0.0
        %1909 = vmatprep.subr.mxu0 0.0
        %1910 = vmatpush1.msra.mxu0 0.0
        %1911 = vmatprep.subr.mxu0 0.0
        %1912 = vmatpush1.msra.mxu0 0.0
        %1913 = vmatprep.subr.mxu0 0.0
        %1914 = vmatpush1.msra.mxu0 0.0
        %1915 = vmatprep.subr.mxu0 0.0
        %1916 = vmatpush1.msra.mxu0 0.0
        %1917 = vmatprep.subr.mxu0 0.0
        %1918 = vmatpush1.msra.mxu0 0.0
        %1919 = vmatprep.subr.mxu0 0.0
        %1920 = vmatpush1.msra.mxu0 0.0
        %1921 = vmatprep.subr.mxu0 0.0
        %1922 = vmatpush1.msra.mxu0 0.0
        %1923 = vmatprep.mubr.f32.mxu0 0.0
        %1924 = vmatmul.mubr.f32.gmra.mrb[0].mxu0 %v1782
        %v1925 = vpop.f32.mrb[0].mxu0
        %v1926 = vadd.f32 %v1855, %v1925
        %v1927 = vpop.f32.mrb[0].mxu0
        %v1928 = vadd.f32 %v1857, %v1927
        %1929 = vdwg.mxu0
        %v1930 = vld [vmem:[#allocation2] sm:$0x1]
        %1932 = vset.pattern.permute.xlu0 0
        %1933 = vperm.xlu0 %1932, %v1930
        %v1934 = vpop.permute.xlu0 %1933
        %v1936 = vlaneseq
        %v1937 = vshrl.u32 %v1936, 7
        %v1938 = vsub.s32 0, %v1937
        %v1939 = vrot.slane %v1934, %v1938
        %v1940 = vadd.f32 %v1926, %v1939
        %v1941 = vadd.f32 %v1928, %v1939
        %v1942 = vsub.f32 0.0, %v1940
        %v1943 = vsub.f32 0.0, %v1941
        %v1944 = vmul.f32 %v1942, 1.442695
        %v1945 = vpow.pop %v1944
        %v1946 = vmul.f32 %v1943, 1.442695
        %v1947 = vpow.pop %v1946
        %v1948 = vadd.f32 %v1945, 1.0
        %v1949 = vadd.f32 %v1947, 1.0
        %v1950 = vrcp.pop %v1948
        %v1951 = vmul.f32 1.0, %v1950
        %v1952 = vrcp.pop %v1949
        %v1953 = vmul.f32 1.0, %v1952
        %v1956 = vcombine.low %v1951, %v1953
        %v1958 = vunpack.c.l.s4 1966171168
        %v1959 = vunpack.c.0.s8 %v1958
        %v1960 = vlaneseq
        %v1961 = vshrl.u32 %v1960, 7
        %v1962 = vsub.s32 %v1959, %v1961
        %v1963 = vrot.slane %v1956, %v1962
        %v1965 = vunpack.c.l.s4 1966171168
        %v1966 = vunpack.c.0.s8 %v1965
        %v1967 = vlaneseq
        %v1968 = vshrl.u32 %v1967, 7
        %v1969 = vsub.s32 %v1966, %v1968
        %v1970 = vrot.slane %v1963, %v1969
        %v1972 = vlaneseq
        %vm1973 = vcmp.ge.s32.totalorder %v1972, 0
        %vm1974 = vcmp.lt.s32.totalorder %v1972, 256
        %vm1975 = vmand %vm1973, %vm1974
        %1976 = vst.msk [vmem:[%s475] sm:$0x3] %vm1975, %v1970
        %s1977 = sand.u32 %s342, 1
        %s1978 = scalar_lea.sflag [#allocation4], %s1977
        %s1979 = sand.u32 %s342, 1
        %s1980 = smul.addr %s1979, 2
        %s1981 = scalar_lea.vmem [#allocation3], %s1980
        // Predicated region
        $region77: #{tpu_custom_call.1} parent=75 // pred_check
          %p1982 = pneg %p352
        $region78: #{tpu_custom_call.1} parent=75 // pred_check_branch
          %1984 = sbr.rel (%p1982) target = $region80
        $region79: #{tpu_custom_call.1} parent=75 // pred_region
          %s1985 = smul.u32 2, %s30
          %s1987 = ssub.s32 32, 32
          %1988 = vsyncadd %s1978, %s1987
          %s1989 = smul.addr %s1985, 16
          %s1990 = scalar_lea.hbm %s14, %s1989
          %s1992 = sshll.u32 %s1981, 4
          %s1993 = int_to_ptr.vmem [resolvable:$true] %s1992
          %1995 = dma.vmem_to_hbm [thread:$0]  %s1993, 32, %s1990, %s1978
        $region80: #{tpu_custom_call.1} parent=75 // pred_fallthru
          _
      $region76: #{tpu_custom_call.1} parent=5 // pred_fallthru
        _
      %p1996 = scmp.le.s32.totalorder 2, %s25
      // Predicated region
      $region81: #{tpu_custom_call.1} parent=5 // pred_check
        %p1997 = pneg %p1996
      $region82: #{tpu_custom_call.1} parent=5 // pred_check_branch
        %1999 = sbr.rel (%p1997) target = $region84
      $region83: #{tpu_custom_call.1} parent=5 // pred_region
        %s2000 = ssub.s32 %s25, 2
        // Predicated region
        $region85: #{tpu_custom_call.1} parent=83 // pred_check
          %p2001 = pneg %p358
        $region86: #{tpu_custom_call.1} parent=83 // pred_check_branch
          %2003 = sbr.rel (%p2001) target = $region88
        $region87: #{tpu_custom_call.1} parent=83 // pred_region
          %s2004 = sand.u32 %s343, 1
          %s2005 = scalar_lea.sflag [#allocation4], %s2004
          %s2006 = sand.u32 %s343, 1
          %s2007 = smul.addr %s2006, 2
          %s2008 = scalar_lea.vmem [#allocation3], %s2007
          %2009 = dma.done %s2005, 32
        $region88: #{tpu_custom_call.1} parent=83 // pred_fallthru
          _
      $region84: #{tpu_custom_call.1} parent=5 // pred_fallthru
        _
    $region6: #{tpu_custom_call.1} parent=1 // loop_footer
      %s29 = sadd.s32 1, %s25
    $region7: #{tpu_custom_call.1} parent=1 // loop_footer_branch
      %24 = sbr.rel target = $region3
    $region8: #{tpu_custom_call.1} parent=1 // loop_exit
      _
    %2010 = vsyncpa [#allocation4], 1
    %s2011 = scalar_lea.sflag [#allocation4], 1
    %2012 = vsyncpa %s2011, 1

</llo_original>
